<compile_context>
chip_gen: v7x
topology: tpu7x:2x2x1
jax: 0.10.0
libtpu: 0.0.40
codegen_flags: <defaults>
</compile_context>

<pallas_src>
import numpy as np
import jax
import jax.numpy as jnp
from jax.experimental import pallas as pl
from jax.experimental.pallas import tpu as pltpu


# ---------------------------------------------------------------------------
# Helpers
# ---------------------------------------------------------------------------

def _round_up_8(n: int) -> int:
    return max(8, ((n + 7) // 8) * 8)


def _same_pad_1d(n, stride, k=3):
    """TF-style SAME padding amounts (lo, hi) for kernel k and given stride."""
    if n % stride == 0:
        pad = max(k - stride, 0)
    else:
        pad = max(k - (n % stride), 0)
    lo = pad // 2
    return lo, pad - lo


def _subsample_paddings(paddings, stride=2):
    """== F.conv1d(paddings, ones([1,1,1]), stride=2) from the torch module.

    Tail is padded with 1.0 (padded) -- the stride-2 subsampling never selects
    the appended element, but 1.0 is the safe value.
    """
    T = paddings.shape[1]
    pad_len = (-T) % stride
    return jnp.pad(paddings, ((0, 0), (0, pad_len)),
                   constant_values=1.0)[:, ::stride]


def _tpu_vmem_capacity() -> int:
    try:
        return int(pltpu.get_tpu_info().vmem_capacity_bytes)
    except Exception:
        return 64 * 1024 * 1024


_VMEM_CAP = _tpu_vmem_capacity()
_VMEM_LIMIT = (_VMEM_CAP * 3) // 4
# Bigger time tiles on 128 MiB parts (v5e/v6e); smaller on 64 MiB parts (v7x).
_DEFAULT_TILE_T = 64 if _VMEM_CAP >= 100 * 1024 * 1024 else 32

# Single-buffer the large, grid-invariant weight operands (pl.Buffered(1)) so
# they are not double-buffered -- the main VMEM relief on v7x.  If the
# installed Pallas/Mosaic rejects this pipeline mode, __main__ retries with the
# default double buffering.
_WEIGHT_BUFFERING = {"single": True}


def _weight_spec(block_shape, index_map):
    if _WEIGHT_BUFFERING["single"]:
        try:
            return pl.BlockSpec(block_shape, index_map,
                                pipeline_mode=pl.Buffered(1))
        except Exception:
            _WEIGHT_BUFFERING["single"] = False
    return pl.BlockSpec(block_shape, index_map)


def _compiler_params():
    return pltpu.CompilerParams(
        dimension_semantics=("parallel", "parallel"),
        vmem_limit_bytes=_VMEM_LIMIT)


# ---------------------------------------------------------------------------
# Pallas kernels
# ---------------------------------------------------------------------------

def _conv1_kernel(x_ref, w_ref, b_ref, pads_ref, out_ref):
    """First Conv2dSubsampling (Cin == 1) as a single MXU matmul per tile.

    x_ref   : (1, TILE1, 6*Fs1)  bf16  banded input rows
    w_ref   : (6*Fs1, N1)        bf16  banded weights (resident)
    b_ref   : (1, N1)            f32   bias (0 at conv2's freq-pad columns)
    pads_ref: (1, TILE1, 1)      f32   per-row padding flags
    out_ref : (1, TILE1, N1)     bf16  lane-dense; N1 = Fop*3*C is already the
                                        (j, kw, c) layout conv2 consumes.
    """
    y = jnp.dot(x_ref[0], w_ref[...], preferred_element_type=jnp.float32)
    y = jnp.maximum(y + b_ref[...], 0.0)          # bias + ReLU (use_tanh=False)
    y = y * (1.0 - pads_ref[0])                   # time-padding mask
    out_ref[0] = y.astype(out_ref.dtype)


def _conv2_kernel(xm_ref, xh_ref, w_ref, b_ref, out_ref):
    """Second Conv2dSubsampling: 3 MXU matmuls with K = 3*Cin, traced accum.

    xm_ref : (1, 2*T2, Fop, 3C) bf16  main time block (conv2-padded rows)
    xh_ref : (1, 1,   Fop, 3C)  bf16  single halo row at 2*(t+1)*T2
    w_ref  : (3, 3C, Co)        bf16  per-kh weights (kw taps concatenated in K)
    b_ref  : (1, Co)            f32
    out_ref: (1, T2*Fop, Co)    bf16  lane-dense (unmasked; mask applied by the
                                       linear kernel, freq-pad rows killed by
                                       zero rows of the linear weight).
    """
    _, two_t, fop, k3 = xm_ref.shape
    t2 = two_t // 2
    x = xm_ref[0].reshape(t2, 2, fop, k3)         # free leading-dim split
    x_even = x[:, 0]                              # input rows 2*to   (kh = 0)
    x_odd = x[:, 1]                               # input rows 2*to+1 (kh = 1)
    x_next = jnp.concatenate([x_even[1:], xh_ref[0]], axis=0)  # rows 2*to+2
    acc = jnp.dot(x_even.reshape(t2 * fop, k3), w_ref[0],
                  preferred_element_type=jnp.float32)
    acc = acc + jnp.dot(x_odd.reshape(t2 * fop, k3), w_ref[1],
                        preferred_element_type=jnp.float32)
    acc = acc + jnp.dot(x_next.reshape(t2 * fop, k3), w_ref[2],
                        preferred_element_type=jnp.float32)
    y = jnp.maximum(acc + b_ref[...], 0.0)        # bias + ReLU
    out_ref[0] = y.astype(out_ref.dtype)


def _linear_kernel(x_ref, w_ref, b_ref, pads_ref, out_ref):
    """Final dense layer; conv2's time mask is applied to the matmul result
    (equivalent to masking its input), bias added after -> matches reference."""
    y = jnp.dot(x_ref[0], w_ref[...], preferred_element_type=jnp.float32)
    mask = 1.0 - pads_ref[0]                      # (T2, 1)
    out_ref[0] = (y * mask + b_ref[...]).astype(out_ref.dtype)


# ---------------------------------------------------------------------------
# Forward pass
# ---------------------------------------------------------------------------

def subsample_forward(inputs, input_paddings, params, *, tile_t=None):
    """Pallas port of Subsample.forward.

    inputs: (B, T, F) f32; input_paddings: (B, T) f32 (1.0 = padded frame).
    Returns (outputs (B, ceil(T/4), D) f32, output_paddings (B, ceil(T/4)) f32).
    """
    if tile_t is None:
        tile_t = _DEFAULT_TILE_T

    x = inputs.astype(jnp.float32)
    B, T, F = x.shape
    w1 = params['conv1_w']          # (3, 3, 1, C)  HWIO
    b1 = params['conv1_b']          # (C,)
    w2 = params['conv2_w']          # (3, 3, C, Co) HWIO
    b2 = params['conv2_b']          # (Co,)
    wl = params['lin_w']            # (Fo2*Co, D)
    bl = params['lin_b']            # (D,)
    C = w1.shape[-1]
    Co = w2.shape[-1]
    D = wl.shape[-1]

    # ---- static geometry ---------------------------------------------------
    pt1, _ = _same_pad_1d(T, 2)            # conv1 SAME pads (time / freq)
    pl1, _ = _same_pad_1d(F, 2)
    To1 = -(-T // 2)
    Fo1 = -(-F // 2)
    pt2, _ = _same_pad_1d(To1, 2)          # conv2 SAME pads
    pl2, _ = _same_pad_1d(Fo1, 2)
    To2 = -(-To1 // 2)
    Fo2 = -(-Fo1 // 2)
    Fs1 = Fo1 + 1                          # conv1 banded-input cols per parity
    Fop = _round_up_8(Fo2)                 # padded conv2 output-freq rows
    K1 = 6 * Fs1                           # conv1 matmul K
    K3 = 3 * C                             # conv2 matmul K (3 freq taps)
    N1 = Fop * K3                          # conv1 matmul N

    tile2 = _round_up_8(min(tile_t, To2))  # conv2/linear time tile
    n_t2 = pl.cdiv(To2, tile2)
    Tp2 = n_t2 * tile2
    tile1 = 2 * tile2                      # conv1 time tile (2 rows per output)
    n_t1 = n_t2 + 1
    S = n_t1 * tile1                       # conv2-padded time rows (>= 2*Tp2+1)

    # ---- paddings ------------------------------------------------------------
    out_pad1 = _subsample_paddings(input_paddings)      # (B, To1)
    out_pad2 = _subsample_paddings(out_pad1)            # (B, To2)
    pads1 = jnp.pad(out_pad1, ((0, 0), (pt2, S - pt2 - To1)),
                    constant_values=1.0)[..., None]     # (B, S, 1)
    pads2 = jnp.pad(out_pad2, ((0, 0), (0, Tp2 - To2)),
                    constant_values=1.0)[..., None]     # (B, Tp2, 1)

    # ---- conv1 operands ------------------------------------------------------
    # xrow[b, s, (kh*2+q)*Fs1 + u] = SAME-padded input at time row
    #   2*(s - pt2) + kh, freq col 2*u + q  (zeros outside the valid range).
    # Intermediate row s == conv2-padded input row s (pt2 leading zero rows are
    # produced by masking; no separate shift/copy needed).
    top = pt1 + 2 * pt2
    xp1 = jnp.pad(x, ((0, 0), (top, 2 * S + 1 - T - top),
                      (pl1, 2 * Fs1 - F - pl1)))
    rows = jnp.stack([xp1[:, kh:kh + 2 * S:2, :] for kh in range(3)], axis=2)
    xrow = (rows.reshape(B, S, 3, Fs1, 2)
                .transpose(0, 1, 2, 4, 3)
                .reshape(B, S, K1)).astype(jnp.bfloat16)

    # Banded conv1 weight, then expanded into the duplicated (j, kw, c) output
    # column layout consumed by conv2 (zero columns where the tap falls inside
    # conv2's SAME frequency padding, matching zero bias there).
    wcol = jnp.zeros((3, 2, Fs1, Fo1, C), jnp.float32)
    f_idx = np.arange(Fo1)
    for kh in range(3):
        for kw in range(3):
            q, dw = kw % 2, kw // 2
            wcol = wcol.at[kh, q, f_idx + dw, f_idx, :].add(
                w1[kh, kw, 0, :].astype(jnp.float32))
    jj = np.arange(Fop)[:, None]
    kk = np.arange(3)[None, :]
    f1 = 2 * jj + kk - pl2                               # (Fop, 3) static
    valid = ((f1 >= 0) & (f1 < Fo1)).astype(np.float32)
    f1c = np.clip(f1, 0, Fo1 - 1)
    wband = wcol[:, :, :, f1c, :]                        # (3,2,Fs1,Fop,3,C)
    wband = wband * jnp.asarray(valid)[None, None, None, :, :, None]
    wband = wband.reshape(K1, N1).astype(jnp.bfloat16)
    brep = (b1.astype(jnp.float32)[None, None, :]
            * jnp.asarray(valid)[:, :, None]).reshape(1, N1)

    # ---- conv1 pallas_call ---------------------------------------------------
    mid = pl.pallas_call(
        _conv1_kernel,
        out_shape=jax.ShapeDtypeStruct((B, S, N1), jnp.bfloat16),
        grid=(B, n_t1),
        in_specs=[
            pl.BlockSpec((1, tile1, K1), lambda b, t: (b, t, 0)),
            _weight_spec((K1, N1), lambda b, t: (0, 0)),
            _weight_spec((1, N1), lambda b, t: (0, 0)),
            pl.BlockSpec((1, tile1, 1), lambda b, t: (b, t, 0)),
        ],
        out_specs=pl.BlockSpec((1, tile1, N1), lambda b, t: (b, t, 0)),
        compiler_params=_compiler_params(),
    )(xrow, wband, brep, pads1)

    # ---- conv2 pallas_call ---------------------------------------------------
    mid4 = mid.reshape(B, S, Fop, K3)          # free: split of the last dim
    w2cat = w2.reshape(3, K3, Co).astype(jnp.bfloat16)
    b2r = b2.reshape(1, Co).astype(jnp.float32)

    conv2_out = pl.pallas_call(
        _conv2_kernel,
        out_shape=jax.ShapeDtypeStruct((B, Tp2 * Fop, Co), jnp.bfloat16),
        grid=(B, n_t2),
        in_specs=[
            pl.BlockSpec((1, 2 * tile2, Fop, K3), lambda b, t: (b, t, 0, 0)),
            pl.BlockSpec((1, 1, Fop, K3),
                         lambda b, t: (b, 2 * (t + 1) * tile2, 0, 0)),
            _weight_spec((3, K3, Co), lambda b, t: (0, 0, 0)),
            _weight_spec((1, Co), lambda b, t: (0, 0)),
        ],
        out_specs=pl.BlockSpec((1, tile2 * Fop, Co), lambda b, t: (b, t, 0)),
        compiler_params=_compiler_params(),
    )(mid4, mid4, w2cat, b2r)

    # ---- linear pallas_call --------------------------------------------------
    act = conv2_out.reshape(B, Tp2, Fop * Co)  # free: regroup of trailing dims
    wlp = jnp.zeros((Fop, Co, D), jnp.float32)
    wlp = wlp.at[:Fo2].set(wl.reshape(Fo2, Co, D).astype(jnp.float32))
    wlp = wlp.reshape(Fop * Co, D).astype(jnp.bfloat16)
    blr = bl.reshape(1, D).astype(jnp.float32)

    out = pl.pallas_call(
        _linear_kernel,
        out_shape=jax.ShapeDtypeStruct((B, Tp2, D), jnp.float32),
        grid=(B, n_t2),
        in_specs=[
            pl.BlockSpec((1, tile2, Fop * Co), lambda b, t: (b, t, 0)),
            _weight_spec((Fop * Co, D), lambda b, t: (0, 0)),
            _weight_spec((1, D), lambda b, t: (0, 0)),
            pl.BlockSpec((1, tile2, 1), lambda b, t: (b, t, 0)),
        ],
        out_specs=pl.BlockSpec((1, tile2, D), lambda b, t: (b, t, 0)),
        compiler_params=_compiler_params(),
    )(act, wlp, blr, pads2)

    # TODO(synk): nn.Dropout(p=0.1) is stochastic in train mode; eval-mode
    # identity is used here.
    return out[:, :To2], out_pad2


# ---------------------------------------------------------------------------
# Pure-JAX reference (numerical sanity check)
# ---------------------------------------------------------------------------

def _reference_conv(x, paddings, w, b):
    B, H, W, Cin = x.shape
    pt, pb = _same_pad_1d(H, 2)
    plft, prt = _same_pad_1d(W, 2)
    out = jax.lax.conv_general_dilated(
        x, w, window_strides=(2, 2), padding=[(pt, pb), (plft, prt)],
        dimension_numbers=('NHWC', 'HWIO', 'NHWC'),
        precision=jax.lax.Precision.HIGHEST)
    out = jnp.maximum(out + b, 0.0)
    out_pad = _subsample_paddings(paddings)
    out = out * (1.0 - out_pad)[:, :, None, None]
    return out, out_pad


def reference_forward(inputs, input_paddings, params):
    x = inputs[:, :, :, None]
    x, p = _reference_conv(x, input_paddings, params['conv1_w'], params['conv1_b'])
    x, p = _reference_conv(x, p, params['conv2_w'], params['conv2_b'])
    B, T2, F2, C = x.shape
    x = x.reshape(B, T2, F2 * C)
    x = x @ params['lin_w'] + params['lin_b']
    return x, p


# ---------------------------------------------------------------------------

if __name__ == "__main__":
    B, T, F, D = 2, 16, 16, 32            # batch, time, freq, encoder_dim
    key = jax.random.PRNGKey(0)
    k_in, k_w1, k_b1, k_w2, k_b2, k_lw, k_lb = jax.random.split(key, 7)

    inputs = jax.random.normal(k_in, (B, T, F), dtype=jnp.float32)
    lengths = jnp.array([T, 10])
    input_paddings = (jnp.arange(T)[None, :] >= lengths[:, None]).astype(jnp.float32)

    F1 = (F + 1) // 2
    F2 = (F1 + 1) // 2
    lin_in = F2 * D                       # LazyLinear in_features

    def xavier_uniform(k, shape, fan_in, fan_out):
        bound = float(np.sqrt(6.0 / (fan_in + fan_out)))
        return jax.random.uniform(k, shape, jnp.float32, -bound, bound)

    lin_bound = 1.0 / float(np.sqrt(lin_in))
    params = {
        'conv1_w': xavier_uniform(k_w1, (3, 3, 1, D), 1 * 9, D * 9),
        'conv1_b': 0.1 * jax.random.normal(k_b1, (D,), jnp.float32),
        'conv2_w': xavier_uniform(k_w2, (3, 3, D, D), D * 9, D * 9),
        'conv2_b': 0.1 * jax.random.normal(k_b2, (D,), jnp.float32),
        'lin_w': jax.random.uniform(k_lw, (lin_in, D), jnp.float32,
                                    -lin_bound, lin_bound),
        'lin_b': jax.random.uniform(k_lb, (D,), jnp.float32,
                                    -lin_bound, lin_bound),
    }

    def _run():
        fwd = jax.jit(subsample_forward)
        o, p = fwd(inputs, input_paddings, params)
        jax.block_until_ready((o, p))
        return o, p

    try:
        out, out_pads = _run()
    except Exception:
        # Fall back to default double-buffered weight specs if the installed
        # Pallas/Mosaic rejects pl.Buffered(1) single-buffering.
        _WEIGHT_BUFFERING["single"] = False
        out, out_pads = _run()

    ref_out, ref_pads = reference_forward(inputs, input_paddings, params)
    np.testing.assert_allclose(np.asarray(out), np.asarray(ref_out),
                               rtol=2e-2, atol=2e-2)
    np.testing.assert_allclose(np.asarray(out_pads), np.asarray(ref_pads),
                               rtol=0, atol=0)
    print("KERNEL_OK")
</pallas_src>

<mosaic_0001>
module attributes {stable_mosaic.version = 11 : i64} {
  func.func @_conv1_kernel(%arg0: i32, %arg1: i32, %arg2: memref<1x16x54xbf16, #tpu.memory_space<vmem>>, %arg3: memref<54x768xbf16, #tpu.memory_space<vmem>>, %arg4: memref<1x768xf32, #tpu.memory_space<vmem>>, %arg5: memref<1x16x1xf32, #tpu.memory_space<vmem>>, %arg6: memref<1x16x768xbf16, #tpu.memory_space<vmem>>) attributes {dimension_semantics = [#tpu.dimension_semantics<parallel>, #tpu.dimension_semantics<parallel>], iteration_bounds = array<i64: 2, 2>, scalar_prefetch = 0 : i64, scratch_operands = 0 : i64, tpu.core_type = #tpu.core_type<tc>, window_params = [{transform_indices = @transform_0, window_bounds = array<i64: 1, 16, 54>}, {pipeline_mode = #tpu.pipeline_mode<synchronous>, transform_indices = @transform_1, window_bounds = array<i64: 54, 768>}, {pipeline_mode = #tpu.pipeline_mode<synchronous>, transform_indices = @transform_2, window_bounds = array<i64: 1, 768>}, {transform_indices = @transform_3, window_bounds = array<i64: 1, 16, 1>}, {transform_indices = @transform_4, window_bounds = array<i64: 1, 16, 768>}]} {
    %c0 = arith.constant 0 : index
    %c0_0 = arith.constant 0 : index
    %c0_1 = arith.constant 0 : index
    %0 = vector.load %arg2[%c0, %c0_0, %c0_1] : memref<1x16x54xbf16, #tpu.memory_space<vmem>>, vector<1x16x54xbf16>
    %1 = vector.shape_cast %0 : vector<1x16x54xbf16> to vector<16x54xbf16>
    %c0_2 = arith.constant 0 : index
    %c0_3 = arith.constant 0 : index
    %2 = vector.load %arg3[%c0_2, %c0_3] : memref<54x768xbf16, #tpu.memory_space<vmem>>, vector<54x768xbf16>
    %cst = arith.constant dense<0.000000e+00> : vector<16x768xf32>
    %3 = tpu.matmul %1, %2, %cst {dimension_numbers = #tpu.dot_dimension_numbers<[1], [0], [0], [1], [0, 0, 1, 1], [], []>} : vector<16x54xbf16>, vector<54x768xbf16>, vector<16x768xf32> -> vector<16x768xf32>
    %c0_4 = arith.constant 0 : index
    %c0_5 = arith.constant 0 : index
    %4 = vector.load %arg4[%c0_4, %c0_5] : memref<1x768xf32, #tpu.memory_space<vmem>>, vector<1x768xf32>
    %5 = vector.broadcast %4 : vector<1x768xf32> to vector<16x768xf32>
    %6 = arith.addf %3, %5 : vector<16x768xf32>
    %cst_6 = arith.constant 0.000000e+00 : f32
    %7 = vector.broadcast %cst_6 : f32 to vector<16x768xf32>
    %8 = arith.maximumf %6, %7 : vector<16x768xf32>
    %c0_7 = arith.constant 0 : index
    %c0_8 = arith.constant 0 : index
    %c0_9 = arith.constant 0 : index
    %9 = vector.load %arg5[%c0_7, %c0_8, %c0_9] : memref<1x16x1xf32, #tpu.memory_space<vmem>>, vector<1x16x1xf32>
    %10 = vector.shape_cast %9 : vector<1x16x1xf32> to vector<16x1xf32>
    %cst_10 = arith.constant 1.000000e+00 : f32
    %11 = vector.broadcast %cst_10 : f32 to vector<16x1xf32>
    %12 = arith.subf %11, %10 : vector<16x1xf32>
    %13 = vector.broadcast %12 : vector<16x1xf32> to vector<16x768xf32>
    %14 = arith.mulf %8, %13 : vector<16x768xf32>
    %15 = arith.truncf %14 : vector<16x768xf32> to vector<16x768xbf16>
    %c0_11 = arith.constant 0 : index
    %c0_12 = arith.constant 0 : index
    %c0_13 = arith.constant 0 : index
    %16 = vector.load %arg6[%c0_11, %c0_12, %c0_13] : memref<1x16x768xbf16, #tpu.memory_space<vmem>>, vector<1x16x768xbf16>
    %17 = vector.shape_cast %16 : vector<1x16x768xbf16> to vector<16x768xbf16>
    %18 = vector.shape_cast %15 : vector<16x768xbf16> to vector<1x16x768xbf16>
    tpu.vector_store %arg6[%c0_11, %c0_12, %c0_13], %18 {strides = array<i32>} : memref<1x16x768xbf16, #tpu.memory_space<vmem>>, vector<1x16x768xbf16>,
    return
  }
  func.func @transform_0(%arg0: i32, %arg1: i32) -> (i32, i32, i32) {
    %c0_i32 = arith.constant 0 : i32
    %c0_i32_0 = arith.constant 0 : i32
    return %arg0, %arg1, %c0_i32 : i32, i32, i32
  }
  func.func @transform_1(%arg0: i32, %arg1: i32) -> (i32, i32) {
    %c0_i32 = arith.constant 0 : i32
    %c0_i32_0 = arith.constant 0 : i32
    %c0_i32_1 = arith.constant 0 : i32
    return %c0_i32, %c0_i32_0 : i32, i32
  }
  func.func @transform_2(%arg0: i32, %arg1: i32) -> (i32, i32) {
    %c0_i32 = arith.constant 0 : i32
    %c0_i32_0 = arith.constant 0 : i32
    %c0_i32_1 = arith.constant 0 : i32
    return %c0_i32, %c0_i32_0 : i32, i32
  }
  func.func @transform_3(%arg0: i32, %arg1: i32) -> (i32, i32, i32) {
    %c0_i32 = arith.constant 0 : i32
    %c0_i32_0 = arith.constant 0 : i32
    return %arg0, %arg1, %c0_i32 : i32, i32, i32
  }
  func.func @transform_4(%arg0: i32, %arg1: i32) -> (i32, i32, i32) {
    %c0_i32 = arith.constant 0 : i32
    %c0_i32_0 = arith.constant 0 : i32
    return %arg0, %arg1, %c0_i32 : i32, i32, i32
  }
}

module attributes {stable_mosaic.version = 11 : i64} {
  func.func @_conv2_kernel(%arg0: i32, %arg1: i32, %arg2: memref<1x16x8x96xbf16, #tpu.memory_space<vmem>>, %arg3: memref<1x1x8x96xbf16, #tpu.memory_space<vmem>>, %arg4: memref<3x96x32xbf16, #tpu.memory_space<vmem>>, %arg5: memref<1x32xf32, #tpu.memory_space<vmem>>, %arg6: memref<1x64x32xbf16, #tpu.memory_space<vmem>>) attributes {dimension_semantics = [#tpu.dimension_semantics<parallel>, #tpu.dimension_semantics<parallel>], iteration_bounds = array<i64: 2, 1>, scalar_prefetch = 0 : i64, scratch_operands = 0 : i64, tpu.core_type = #tpu.core_type<tc>, window_params = [{transform_indices = @transform_0, window_bounds = array<i64: 1, 16, 8, 96>}, {transform_indices = @transform_1, window_bounds = array<i64: 1, 1, 8, 96>}, {pipeline_mode = #tpu.pipeline_mode<synchronous>, transform_indices = @transform_2, window_bounds = array<i64: 3, 96, 32>}, {pipeline_mode = #tpu.pipeline_mode<synchronous>, transform_indices = @transform_3, window_bounds = array<i64: 1, 32>}, {transform_indices = @transform_4, window_bounds = array<i64: 1, 64, 32>}]} {
    %c0 = arith.constant 0 : index
    %c0_0 = arith.constant 0 : index
    %c0_1 = arith.constant 0 : index
    %c0_2 = arith.constant 0 : index
    %0 = vector.load %arg2[%c0, %c0_0, %c0_1, %c0_2] : memref<1x16x8x96xbf16, #tpu.memory_space<vmem>>, vector<1x16x8x96xbf16>
    %1 = vector.shape_cast %0 : vector<1x16x8x96xbf16> to vector<16x8x96xbf16>
    %2 = vector.shape_cast %1 : vector<16x8x96xbf16> to vector<8x2x8x96xbf16>
    %3 = vector.extract_strided_slice %2 {offsets = [0, 0, 0, 0], sizes = [8, 1, 8, 96], strides = [1, 1, 1, 1]} : vector<8x2x8x96xbf16> to vector<8x1x8x96xbf16>
    %4 = vector.shape_cast %3 : vector<8x1x8x96xbf16> to vector<8x8x96xbf16>
    %5 = vector.extract_strided_slice %2 {offsets = [0, 1, 0, 0], sizes = [8, 1, 8, 96], strides = [1, 1, 1, 1]} : vector<8x2x8x96xbf16> to vector<8x1x8x96xbf16>
    %6 = vector.shape_cast %5 : vector<8x1x8x96xbf16> to vector<8x8x96xbf16>
    %7 = vector.extract_strided_slice %4 {offsets = [1, 0, 0], sizes = [7, 8, 96], strides = [1, 1, 1]} : vector<8x8x96xbf16> to vector<7x8x96xbf16>
    %c0_3 = arith.constant 0 : index
    %c0_4 = arith.constant 0 : index
    %c0_5 = arith.constant 0 : index
    %c0_6 = arith.constant 0 : index
    %8 = vector.load %arg3[%c0_3, %c0_4, %c0_5, %c0_6] : memref<1x1x8x96xbf16, #tpu.memory_space<vmem>>, vector<1x1x8x96xbf16>
    %9 = vector.shape_cast %8 : vector<1x1x8x96xbf16> to vector<1x8x96xbf16>
    %10 = tpu.concatenate %7, %9 in 0 : vector<7x8x96xbf16>, vector<1x8x96xbf16> -> vector<8x8x96xbf16>
    %11 = vector.shape_cast %4 : vector<8x8x96xbf16> to vector<64x96xbf16>
    %c0_7 = arith.constant 0 : index
    %c0_8 = arith.constant 0 : index
    %c0_9 = arith.constant 0 : index
    %12 = vector.load %arg4[%c0_7, %c0_8, %c0_9] : memref<3x96x32xbf16, #tpu.memory_space<vmem>>, vector<1x96x32xbf16>
    %13 = vector.shape_cast %12 : vector<1x96x32xbf16> to vector<96x32xbf16>
    %cst = arith.constant dense<0.000000e+00> : vector<64x32xf32>
    %14 = tpu.matmul %11, %13, %cst {dimension_numbers = #tpu.dot_dimension_numbers<[1], [0], [0], [1], [0, 0, 1, 1], [], []>} : vector<64x96xbf16>, vector<96x32xbf16>, vector<64x32xf32> -> vector<64x32xf32>
    %15 = vector.shape_cast %6 : vector<8x8x96xbf16> to vector<64x96xbf16>
    %c1 = arith.constant 1 : index
    %c0_10 = arith.constant 0 : index
    %c0_11 = arith.constant 0 : index
    %16 = vector.load %arg4[%c1, %c0_10, %c0_11] : memref<3x96x32xbf16, #tpu.memory_space<vmem>>, vector<1x96x32xbf16>
    %17 = vector.shape_cast %16 : vector<1x96x32xbf16> to vector<96x32xbf16>
    %cst_12 = arith.constant dense<0.000000e+00> : vector<64x32xf32>
    %18 = tpu.matmul %15, %17, %cst_12 {dimension_numbers = #tpu.dot_dimension_numbers<[1], [0], [0], [1], [0, 0, 1, 1], [], []>} : vector<64x96xbf16>, vector<96x32xbf16>, vector<64x32xf32> -> vector<64x32xf32>
    %19 = arith.addf %14, %18 : vector<64x32xf32>
    %20 = vector.shape_cast %10 : vector<8x8x96xbf16> to vector<64x96xbf16>
    %c2 = arith.constant 2 : index
    %c0_13 = arith.constant 0 : index
    %c0_14 = arith.constant 0 : index
    %21 = vector.load %arg4[%c2, %c0_13, %c0_14] : memref<3x96x32xbf16, #tpu.memory_space<vmem>>, vector<1x96x32xbf16>
    %22 = vector.shape_cast %21 : vector<1x96x32xbf16> to vector<96x32xbf16>
    %cst_15 = arith.constant dense<0.000000e+00> : vector<64x32xf32>
    %23 = tpu.matmul %20, %22, %cst_15 {dimension_numbers = #tpu.dot_dimension_numbers<[1], [0], [0], [1], [0, 0, 1, 1], [], []>} : vector<64x96xbf16>, vector<96x32xbf16>, vector<64x32xf32> -> vector<64x32xf32>
    %24 = arith.addf %19, %23 : vector<64x32xf32>
    %c0_16 = arith.constant 0 : index
    %c0_17 = arith.constant 0 : index
    %25 = vector.load %arg5[%c0_16, %c0_17] : memref<1x32xf32, #tpu.memory_space<vmem>>, vector<1x32xf32>
    %26 = vector.broadcast %25 : vector<1x32xf32> to vector<64x32xf32>
    %27 = arith.addf %24, %26 : vector<64x32xf32>
    %cst_18 = arith.constant 0.000000e+00 : f32
    %28 = vector.broadcast %cst_18 : f32 to vector<64x32xf32>
    %29 = arith.maximumf %27, %28 : vector<64x32xf32>
    %30 = arith.truncf %29 : vector<64x32xf32> to vector<64x32xbf16>
    %c0_19 = arith.constant 0 : index
    %c0_20 = arith.constant 0 : index
    %c0_21 = arith.constant 0 : index
    %31 = vector.load %arg6[%c0_19, %c0_20, %c0_21] : memref<1x64x32xbf16, #tpu.memory_space<vmem>>, vector<1x64x32xbf16>
    %32 = vector.shape_cast %31 : vector<1x64x32xbf16> to vector<64x32xbf16>
    %33 = vector.shape_cast %30 : vector<64x32xbf16> to vector<1x64x32xbf16>
    tpu.vector_store %arg6[%c0_19, %c0_20, %c0_21], %33 {strides = array<i32>} : memref<1x64x32xbf16, #tpu.memory_space<vmem>>, vector<1x64x32xbf16>,
    return
  }
  func.func @transform_0(%arg0: i32, %arg1: i32) -> (i32, i32, i32, i32) {
    %c0_i32 = arith.constant 0 : i32
    %c0_i32_0 = arith.constant 0 : i32
    %c0_i32_1 = arith.constant 0 : i32
    return %arg0, %arg1, %c0_i32, %c0_i32_0 : i32, i32, i32, i32
  }
  func.func @transform_1(%arg0: i32, %arg1: i32) -> (i32, i32, i32, i32) {
    %c1_i32 = arith.constant 1 : i32
    %0 = arith.addi %arg1, %c1_i32 : i32
    %c2_i32 = arith.constant 2 : i32
    %1 = arith.muli %c2_i32, %0 : i32
    %c8_i32 = arith.constant 8 : i32
    %2 = arith.muli %1, %c8_i32 : i32
    %c0_i32 = arith.constant 0 : i32
    %c0_i32_0 = arith.constant 0 : i32
    %c0_i32_1 = arith.constant 0 : i32
    return %arg0, %2, %c0_i32, %c0_i32_0 : i32, i32, i32, i32
  }
  func.func @transform_2(%arg0: i32, %arg1: i32) -> (i32, i32, i32) {
    %c0_i32 = arith.constant 0 : i32
    %c0_i32_0 = arith.constant 0 : i32
    %c0_i32_1 = arith.constant 0 : i32
    %c0_i32_2 = arith.constant 0 : i32
    return %c0_i32, %c0_i32_0, %c0_i32_1 : i32, i32, i32
  }
  func.func @transform_3(%arg0: i32, %arg1: i32) -> (i32, i32) {
    %c0_i32 = arith.constant 0 : i32
    %c0_i32_0 = arith.constant 0 : i32
    %c0_i32_1 = arith.constant 0 : i32
    return %c0_i32, %c0_i32_0 : i32, i32
  }
  func.func @transform_4(%arg0: i32, %arg1: i32) -> (i32, i32, i32) {
    %c0_i32 = arith.constant 0 : i32
    %c0_i32_0 = arith.constant 0 : i32
    return %arg0, %arg1, %c0_i32 : i32, i32, i32
  }
}

module attributes {stable_mosaic.version = 11 : i64} {
  func.func @_linear_kernel(%arg0: i32, %arg1: i32, %arg2: memref<1x8x256xbf16, #tpu.memory_space<vmem>>, %arg3: memref<256x32xbf16, #tpu.memory_space<vmem>>, %arg4: memref<1x32xf32, #tpu.memory_space<vmem>>, %arg5: memref<1x8x1xf32, #tpu.memory_space<vmem>>, %arg6: memref<1x8x32xf32, #tpu.memory_space<vmem>>) attributes {dimension_semantics = [#tpu.dimension_semantics<parallel>, #tpu.dimension_semantics<parallel>], iteration_bounds = array<i64: 2, 1>, scalar_prefetch = 0 : i64, scratch_operands = 0 : i64, tpu.core_type = #tpu.core_type<tc>, window_params = [{transform_indices = @transform_0, window_bounds = array<i64: 1, 8, 256>}, {pipeline_mode = #tpu.pipeline_mode<synchronous>, transform_indices = @transform_1, window_bounds = array<i64: 256, 32>}, {pipeline_mode = #tpu.pipeline_mode<synchronous>, transform_indices = @transform_2, window_bounds = array<i64: 1, 32>}, {transform_indices = @transform_3, window_bounds = array<i64: 1, 8, 1>}, {transform_indices = @transform_4, window_bounds = array<i64: 1, 8, 32>}]} {
    %c0 = arith.constant 0 : index
    %c0_0 = arith.constant 0 : index
    %c0_1 = arith.constant 0 : index
    %0 = vector.load %arg2[%c0, %c0_0, %c0_1] : memref<1x8x256xbf16, #tpu.memory_space<vmem>>, vector<1x8x256xbf16>
    %1 = vector.shape_cast %0 : vector<1x8x256xbf16> to vector<8x256xbf16>
    %c0_2 = arith.constant 0 : index
    %c0_3 = arith.constant 0 : index
    %2 = vector.load %arg3[%c0_2, %c0_3] : memref<256x32xbf16, #tpu.memory_space<vmem>>, vector<256x32xbf16>
    %cst = arith.constant dense<0.000000e+00> : vector<8x32xf32>
    %3 = tpu.matmul %1, %2, %cst {dimension_numbers = #tpu.dot_dimension_numbers<[1], [0], [0], [1], [0, 0, 1, 1], [], []>} : vector<8x256xbf16>, vector<256x32xbf16>, vector<8x32xf32> -> vector<8x32xf32>
    %c0_4 = arith.constant 0 : index
    %c0_5 = arith.constant 0 : index
    %c0_6 = arith.constant 0 : index
    %4 = vector.load %arg5[%c0_4, %c0_5, %c0_6] : memref<1x8x1xf32, #tpu.memory_space<vmem>>, vector<1x8x1xf32>
    %5 = vector.shape_cast %4 : vector<1x8x1xf32> to vector<8x1xf32>
    %cst_7 = arith.constant 1.000000e+00 : f32
    %6 = vector.broadcast %cst_7 : f32 to vector<8x1xf32>
    %7 = arith.subf %6, %5 : vector<8x1xf32>
    %8 = vector.broadcast %7 : vector<8x1xf32> to vector<8x32xf32>
    %9 = arith.mulf %3, %8 : vector<8x32xf32>
    %c0_8 = arith.constant 0 : index
    %c0_9 = arith.constant 0 : index
    %10 = vector.load %arg4[%c0_8, %c0_9] : memref<1x32xf32, #tpu.memory_space<vmem>>, vector<1x32xf32>
    %11 = vector.broadcast %10 : vector<1x32xf32> to vector<8x32xf32>
    %12 = arith.addf %9, %11 : vector<8x32xf32>
    %c0_10 = arith.constant 0 : index
    %c0_11 = arith.constant 0 : index
    %c0_12 = arith.constant 0 : index
    %13 = vector.load %arg6[%c0_10, %c0_11, %c0_12] : memref<1x8x32xf32, #tpu.memory_space<vmem>>, vector<1x8x32xf32>
    %14 = vector.shape_cast %13 : vector<1x8x32xf32> to vector<8x32xf32>
    %15 = vector.shape_cast %12 : vector<8x32xf32> to vector<1x8x32xf32>
    tpu.vector_store %arg6[%c0_10, %c0_11, %c0_12], %15 {strides = array<i32>} : memref<1x8x32xf32, #tpu.memory_space<vmem>>, vector<1x8x32xf32>,
    return
  }
  func.func @transform_0(%arg0: i32, %arg1: i32) -> (i32, i32, i32) {
    %c0_i32 = arith.constant 0 : i32
    %c0_i32_0 = arith.constant 0 : i32
    return %arg0, %arg1, %c0_i32 : i32, i32, i32
  }
  func.func @transform_1(%arg0: i32, %arg1: i32) -> (i32, i32) {
    %c0_i32 = arith.constant 0 : i32
    %c0_i32_0 = arith.constant 0 : i32
    %c0_i32_1 = arith.constant 0 : i32
    return %c0_i32, %c0_i32_0 : i32, i32
  }
  func.func @transform_2(%arg0: i32, %arg1: i32) -> (i32, i32) {
    %c0_i32 = arith.constant 0 : i32
    %c0_i32_0 = arith.constant 0 : i32
    %c0_i32_1 = arith.constant 0 : i32
    return %c0_i32, %c0_i32_0 : i32, i32
  }
  func.func @transform_3(%arg0: i32, %arg1: i32) -> (i32, i32, i32) {
    %c0_i32 = arith.constant 0 : i32
    %c0_i32_0 = arith.constant 0 : i32
    return %arg0, %arg1, %c0_i32 : i32, i32, i32
  }
  func.func @transform_4(%arg0: i32, %arg1: i32) -> (i32, i32, i32) {
    %c0_i32 = arith.constant 0 : i32
    %c0_i32_0 = arith.constant 0 : i32
    return %arg0, %arg1, %c0_i32 : i32, i32, i32
  }
}

</mosaic_0001>

<llo_original>
// kernel: subsample_forward.3
$region0: #{subsample_forward.3}
  #allocation0 [shape = 'u32[]', space=smem, size = 0x4, offset = 0x4, fixed_abs, tag = 'smem constant byte address 0x4 - core index']
  #allocation1 [shape = 'u32[144,128]{1,0:T(1,128)}', space=vmem, size = 0x12000, scoped, tag = 'internal scratch']
  %s0 = inlined_call_operand.vmem [shape: bf16[2,32,54], index: 0, kind: input, shape index: {}]
  %s1 = inlined_call_operand.vmem [shape: bf16[54,768], index: 1, kind: input, shape index: {}]
  %s2 = inlined_call_operand.vmem [shape: f32[1,768], index: 2, kind: input, shape index: {}]
  %s3 = inlined_call_operand.vmem [shape: f32[2,32,1], index: 3, kind: input, shape index: {}]
  %s4 = inlined_call_operand.vmem [shape: bf16[2,32,768], index: 4, kind: output, shape index: {}]
  %s5 = sld [smem:[#allocation0]]
  $region49: #{subsample_forward.3} parent=0
    _
  %s7 = ssub.s32 1, %s5
  %s8 = scalar_select 0, %s7, %s5
  loop: start=0, step=1, limit=6
  $region2: #{subsample_forward.3} parent=0 // loop_pre_header
    _
  $region3: #{subsample_forward.3} parent=0 // loop_header
    %s10 = sphi 0, %s14
    %p11 = scmp.ge.s32.totalorder %s10, 6
    %s17 = sphi 0, %s29
    %s18 = sphi 0, %s25
    %s19 = sphi 0, %s17
    %s20 = sphi 0, %s18
    %s21 = sphi 0, %s19
    %s22 = sphi 0, %s20
    %s34 = sphi 0, %s36
    %s37 = sphi 0, %s34
    %s38 = sphi 0, %s37
    %s54 = sphi 0, %s38
    %s58 = sphi 0, %s58
    %s60 = sphi 0, %s58
    %s61 = sphi 0, %s60
    %s75 = sphi 0, %s61
    %s79 = sphi 0, %s79
    %s81 = sphi 0, %s79
    %s82 = sphi 0, %s81
    %s96 = sphi 0, %s82
    %s104 = sphi 0, %s106
    %s107 = sphi 0, %s104
    %s108 = sphi 0, %s107
    %s124 = sphi 0, %s108
    %s132 = sphi 0, %s134
    %s135 = sphi 0, %s132
    %s136 = sphi 0, %s135
    %s152 = sphi 0, %s136
  $region4: #{subsample_forward.3} parent=0 // loop_header_branch
    %13 = sbr.rel (%p11) target = $region8
  $region5: #{subsample_forward.3} parent=0 // loop_body
    %s15 = ssub.s32 %s10, 1
    %s16 = ssub.s32 %s10, 2
    %s23 = sadd.s32 1, %s18
    %p24 = scmp.ge.s32.totalorder %s23, 2
    %s25 = scalar_select %p24, 0, %s23
    %s26 = sadd.s32 1, %s17
    %s27 = scalar_select %p24, %s26, %s17
    %p28 = scmp.ge.s32.totalorder %s27, 2
    %s29 = scalar_select %p28, 0, %s27
    %s30 = ssub.s32 %s17, %s29
    %s31 = ssub.s32 %s18, %s25
    %s32 = sor.u32 %s30, %s31
    %p33 = scmp.eq.s32.totalorder %s32, 0
    %s35 = sadd.s32 %s34, 1
    %s36 = scalar_select %p33, %s34, %s35
    %p39 = pneg %p33
    %p40 = scmp.eq.s32.totalorder %s10, 3
    %p41 = por %p39, %p40
    %p42 = scmp.ne.s32.totalorder %s34, %s37
    %p43 = scmp.eq.s32.totalorder %s10, 0
    %p44 = por %p42, %p43
    %p45 = scmp.ne.s32.totalorder %s34, %s37
    %p46 = scmp.eq.s32.totalorder %s15, 3
    %p47 = por %p45, %p46
    %p48 = scmp.ne.s32.totalorder %s37, %s38
    %p49 = scmp.eq.s32.totalorder %s15, 0
    %p50 = por %p48, %p49
    %p51 = scmp.ne.s32.totalorder %s37, %s38
    %p52 = scmp.eq.s32.totalorder %s16, 3
    %p53 = por %p51, %p52
    %p55 = scmp.ne.s32.totalorder %s38, %s54
    %p56 = scmp.eq.s32.totalorder %s16, 0
    %p57 = por %p55, %p56
    %s59 = sadd.s32 %s58, 1
    %p62 = scmp.eq.s32.totalorder %s10, 3
    %p63 = scmp.ne.s32.totalorder %s58, %s60
    %p64 = scmp.eq.s32.totalorder %s10, 0
    %p65 = por %p63, %p64
    %p66 = scmp.ne.s32.totalorder %s58, %s60
    %p67 = scmp.eq.s32.totalorder %s15, 3
    %p68 = por %p66, %p67
    %p69 = scmp.ne.s32.totalorder %s60, %s61
    %p70 = scmp.eq.s32.totalorder %s15, 0
    %p71 = por %p69, %p70
    %p72 = scmp.ne.s32.totalorder %s60, %s61
    %p73 = scmp.eq.s32.totalorder %s16, 3
    %p74 = por %p72, %p73
    %p76 = scmp.ne.s32.totalorder %s61, %s75
    %p77 = scmp.eq.s32.totalorder %s16, 0
    %p78 = por %p76, %p77
    %s80 = sadd.s32 %s79, 1
    %p83 = scmp.eq.s32.totalorder %s10, 3
    %p84 = scmp.ne.s32.totalorder %s79, %s81
    %p85 = scmp.eq.s32.totalorder %s10, 0
    %p86 = por %p84, %p85
    %p87 = scmp.ne.s32.totalorder %s79, %s81
    %p88 = scmp.eq.s32.totalorder %s15, 3
    %p89 = por %p87, %p88
    %p90 = scmp.ne.s32.totalorder %s81, %s82
    %p91 = scmp.eq.s32.totalorder %s15, 0
    %p92 = por %p90, %p91
    %p93 = scmp.ne.s32.totalorder %s81, %s82
    %p94 = scmp.eq.s32.totalorder %s16, 3
    %p95 = por %p93, %p94
    %p97 = scmp.ne.s32.totalorder %s82, %s96
    %p98 = scmp.eq.s32.totalorder %s16, 0
    %p99 = por %p97, %p98
    %s100 = ssub.s32 %s17, %s29
    %s101 = ssub.s32 %s18, %s25
    %s102 = sor.u32 %s100, %s101
    %p103 = scmp.eq.s32.totalorder %s102, 0
    %s105 = sadd.s32 %s104, 1
    %s106 = scalar_select %p103, %s104, %s105
    %p109 = pneg %p103
    %p110 = scmp.eq.s32.totalorder %s10, 3
    %p111 = por %p109, %p110
    %p112 = scmp.ne.s32.totalorder %s104, %s107
    %p113 = scmp.eq.s32.totalorder %s10, 0
    %p114 = por %p112, %p113
    %p115 = scmp.ne.s32.totalorder %s104, %s107
    %p116 = scmp.eq.s32.totalorder %s15, 3
    %p117 = por %p115, %p116
    %p118 = scmp.ne.s32.totalorder %s107, %s108
    %p119 = scmp.eq.s32.totalorder %s15, 0
    %p120 = por %p118, %p119
    %p121 = scmp.ne.s32.totalorder %s107, %s108
    %p122 = scmp.eq.s32.totalorder %s16, 3
    %p123 = por %p121, %p122
    %p125 = scmp.ne.s32.totalorder %s108, %s124
    %p126 = scmp.eq.s32.totalorder %s16, 0
    %p127 = por %p125, %p126
    %s128 = ssub.s32 %s17, %s29
    %s129 = ssub.s32 %s18, %s25
    %s130 = sor.u32 %s128, %s129
    %p131 = scmp.eq.s32.totalorder %s130, 0
    %s133 = sadd.s32 %s132, 1
    %s134 = scalar_select %p131, %s132, %s133
    %p137 = pneg %p131
    %p138 = scmp.eq.s32.totalorder %s10, 3
    %p139 = por %p137, %p138
    %p140 = scmp.ne.s32.totalorder %s132, %s135
    %p141 = scmp.eq.s32.totalorder %s10, 0
    %p142 = por %p140, %p141
    %p143 = scmp.ne.s32.totalorder %s132, %s135
    %p144 = scmp.eq.s32.totalorder %s15, 3
    %p145 = por %p143, %p144
    %p146 = scmp.ne.s32.totalorder %s135, %s136
    %p147 = scmp.eq.s32.totalorder %s15, 0
    %p148 = por %p146, %p147
    %p149 = scmp.ne.s32.totalorder %s135, %s136
    %p150 = scmp.eq.s32.totalorder %s16, 3
    %p151 = por %p149, %p150
    %p153 = scmp.ne.s32.totalorder %s136, %s152
    %p154 = scmp.eq.s32.totalorder %s16, 0
    %p155 = por %p153, %p154
    %p156 = scmp.le.s32.totalorder 1, %s10
    %p157 = scmp.lt.s32.totalorder %s10, 5
    %p158 = pnand %p156, %p157
    %p159 = pneg %p158
    // Predicated region
    $region9: #{subsample_forward.3} parent=5 // pred_check
      _
    $region10: #{subsample_forward.3} parent=5 // pred_check_branch
      %161 = sbr.rel (%p158) target = $region12
    $region11: #{subsample_forward.3} parent=5 // pred_region
      %s162 = ssub.s32 %s10, 1
      // Predicated region
      $region13: #{subsample_forward.3} parent=11 // pred_check
        %p163 = pneg %p71
      $region14: #{subsample_forward.3} parent=11 // pred_check_branch
        %165 = sbr.rel (%p163) target = $region16
      $region15: #{subsample_forward.3} parent=11 // pred_region
        _
      $region16: #{subsample_forward.3} parent=11 // pred_fallthru
        _
      // Predicated region
      $region17: #{subsample_forward.3} parent=11 // pred_check
        %p166 = pneg %p92
      $region18: #{subsample_forward.3} parent=11 // pred_check_branch
        %168 = sbr.rel (%p166) target = $region20
      $region19: #{subsample_forward.3} parent=11 // pred_region
        _
      $region20: #{subsample_forward.3} parent=11 // pred_fallthru
        _
    $region12: #{subsample_forward.3} parent=5 // pred_fallthru
      _
    %p169 = scmp.lt.s32.totalorder %s10, 4
    // Predicated region
    $region21: #{subsample_forward.3} parent=5 // pred_check
      %p170 = pneg %p169
    $region22: #{subsample_forward.3} parent=5 // pred_check_branch
      %172 = sbr.rel (%p170) target = $region24
    $region23: #{subsample_forward.3} parent=5 // pred_region
      // Predicated region
      $region25: #{subsample_forward.3} parent=23 // pred_check
        %p173 = pneg %p44
      $region26: #{subsample_forward.3} parent=23 // pred_check_branch
        %175 = sbr.rel (%p173) target = $region28
      $region27: #{subsample_forward.3} parent=23 // pred_region
        %s176 = smul.u32 2, %s18
        %p177 = scmp.lt.s32.totalorder %s17, 1
        %s178 = scalar_select %p177, %s17, 1
        %p179 = scmp.lt.s32.totalorder %s176, 3
        %s180 = scalar_select %p179, %s176, 3
        %s181 = smul.addr %s178, 4
        %s182 = sadd.s32 %s180, %s181
        %s183 = smul.addr %s182, 4
        %s184 = scalar_lea.vmem %s0, %s183
        %s185 = smul.u32 2, %s18
      $region28: #{subsample_forward.3} parent=23 // pred_fallthru
        _
      // Predicated region
      $region29: #{subsample_forward.3} parent=23 // pred_check
        %p186 = pneg %p114
      $region30: #{subsample_forward.3} parent=23 // pred_check_branch
        %188 = sbr.rel (%p186) target = $region32
      $region31: #{subsample_forward.3} parent=23 // pred_region
        %s189 = smul.u32 2, %s18
        %p190 = scmp.lt.s32.totalorder %s17, 1
        %s191 = scalar_select %p190, %s17, 1
        %p192 = scmp.lt.s32.totalorder %s189, 3
        %s193 = scalar_select %p192, %s189, 3
        %s194 = smul.addr %s191, 4
        %s195 = sadd.s32 %s193, %s194
        %s196 = smul.addr %s195, 8
        %s197 = scalar_lea.vmem %s3, %s196
        %s198 = smul.u32 2, %s18
      $region32: #{subsample_forward.3} parent=23 // pred_fallthru
        _
    $region24: #{subsample_forward.3} parent=5 // pred_fallthru
      _
    %p199 = scmp.le.s32.totalorder 1, %s10
    %p200 = scmp.lt.s32.totalorder %s10, 5
    %p201 = pnand %p199, %p200
    %p202 = pneg %p201
    // Predicated region
    $region33: #{subsample_forward.3} parent=5 // pred_check
      _
    $region34: #{subsample_forward.3} parent=5 // pred_check_branch
      %204 = sbr.rel (%p201) target = $region36
    $region35: #{subsample_forward.3} parent=5 // pred_region
      %s205 = ssub.s32 %s10, 1
      %s206 = smul.u32 2, %s20
      %p207 = scmp.lt.s32.totalorder %s19, 1
      %s208 = scalar_select %p207, %s19, 1
      %p209 = scmp.lt.s32.totalorder %s206, 3
      %s210 = scalar_select %p209, %s206, 3
      %s211 = smul.addr %s208, 4
      %s212 = sadd.s32 %s210, %s211
      %s213 = smul.addr %s212, 4
      %s214 = scalar_lea.vmem %s0, %s213
      %p215 = pneg %p50
      %p216 = pneg %p47
      %p217 = pneg %p71
      %p218 = pneg %p68
      %p219 = pneg %p92
      %p220 = pneg %p89
      %s221 = smul.u32 2, %s20
      %p222 = scmp.lt.s32.totalorder %s19, 1
      %s223 = scalar_select %p222, %s19, 1
      %p224 = scmp.lt.s32.totalorder %s221, 3
      %s225 = scalar_select %p224, %s221, 3
      %s226 = smul.addr %s223, 4
      %s227 = sadd.s32 %s225, %s226
      %s228 = smul.addr %s227, 8
      %s229 = scalar_lea.vmem %s3, %s228
      %p230 = pneg %p120
      %p231 = pneg %p117
      %p232 = pneg %p148
      %p233 = pneg %p145
      %s234 = smul.u32 2, %s20
      %p235 = scmp.lt.s32.totalorder %s19, 1
      %s236 = scalar_select %p235, %s19, 1
      %p237 = scmp.lt.s32.totalorder %s234, 3
      %s238 = scalar_select %p237, %s234, 3
      %s239 = smul.addr %s238, 6
      %s240 = smul.addr %s236, 24
      %s241 = sadd.s32 %s239, %s240
      %s242 = smul.addr %s241, 4
      %s243 = scalar_lea.vmem %s4, %s242
      %s244 = smul.u32 2, %s20
      %p245 = scmp.lt.s32.totalorder %s19, 1
      %s246 = scalar_select %p245, %s19, 1
      %p247 = scmp.lt.s32.totalorder %s244, 3
      %s248 = scalar_select %p247, %s244, 3
      %s249 = smul.addr %s246, 4
      %s250 = sadd.s32 %s248, %s249
      %s251 = smul.addr %s250, 4
      %s252 = scalar_lea.vmem %s0, %s251
      %s253 = smul.u32 2, %s20
      %s254 = smul.u32 2, %s20
      %p255 = scmp.lt.s32.totalorder %s19, 1
      %s256 = scalar_select %p255, %s19, 1
      %p257 = scmp.lt.s32.totalorder %s254, 3
      %s258 = scalar_select %p257, %s254, 3
      %s259 = smul.addr %s256, 4
      %s260 = sadd.s32 %s258, %s259
      %s261 = smul.addr %s260, 8
      %s262 = scalar_lea.vmem %s3, %s261
      %s263 = smul.u32 2, %s20
      %s264 = smul.u32 2, %s20
      %p265 = scmp.lt.s32.totalorder %s19, 1
      %s266 = scalar_select %p265, %s19, 1
      %p267 = scmp.lt.s32.totalorder %s264, 3
      %s268 = scalar_select %p267, %s264, 3
      %s269 = smul.addr %s268, 6
      %s270 = smul.addr %s266, 24
      %s271 = sadd.s32 %s269, %s270
      %s272 = smul.addr %s271, 4
      %s273 = scalar_lea.vmem %s4, %s272
      %s274 = smul.u32 2, %s20
      %v276 = vld [vmem:[%s252] sm:$0xf]
      %v277 = vld [vmem:[%s252 + $0x4] sm:$0xf]
      %v278 = vld [vmem:[%s1] sm:$0xff]
      %v279 = vld [vmem:[%s1 + $0x8] sm:$0xff]
      %v280 = vld [vmem:[%s1 + $0x10] sm:$0xff]
      %v281 = vld [vmem:[%s1 + $0x18] sm:$0xff]
      %v282 = vld [vmem:[%s1 + $0x20] sm:$0xff]
      %v283 = vld [vmem:[%s1 + $0x28] sm:$0xff]
      %v284 = vld [vmem:[%s1 + $0x30] sm:$0xff]
      %v285 = vld [vmem:[%s1 + $0x38] sm:$0xff]
      %v286 = vld [vmem:[%s1 + $0x40] sm:$0xff]
      %v287 = vld [vmem:[%s1 + $0x48] sm:$0xff]
      %v288 = vld [vmem:[%s1 + $0x50] sm:$0xff]
      %v289 = vld [vmem:[%s1 + $0x58] sm:$0xff]
      %v290 = vld [vmem:[%s1 + $0x60] sm:$0xff]
      %v291 = vld [vmem:[%s1 + $0x68] sm:$0xff]
      %v292 = vld [vmem:[%s1 + $0x70] sm:$0xff]
      %v293 = vld [vmem:[%s1 + $0x78] sm:$0xff]
      %v294 = vld [vmem:[%s1 + $0x80] sm:$0xff]
      %v295 = vld [vmem:[%s1 + $0x88] sm:$0xff]
      %v296 = vld [vmem:[%s1 + $0x90] sm:$0x77]
      %v297 = vld [vmem:[%s1 + $0x98] sm:$0x77]
      %v298 = vld [vmem:[%s1 + $0xa0] sm:$0x77]
      %v299 = vld [vmem:[%s2] sm:$0x3f]
      %v301 = vlaneseq
      %v302 = vshrl.u32 %v301, 7
      %v303 = vsub.s32 0, %v302
      %v304 = vrot.slane %v299, %v303
      %v305 = vlaneseq
      %v306 = vshrl.u32 %v305, 7
      %v307 = vsub.s32 1, %v306
      %v308 = vrot.slane %v299, %v307
      %v309 = vlaneseq
      %v310 = vshrl.u32 %v309, 7
      %v311 = vsub.s32 2, %v310
      %v312 = vrot.slane %v299, %v311
      %v313 = vlaneseq
      %v314 = vshrl.u32 %v313, 7
      %v315 = vsub.s32 3, %v314
      %v316 = vrot.slane %v299, %v315
      %v317 = vlaneseq
      %v318 = vshrl.u32 %v317, 7
      %v319 = vsub.s32 4, %v318
      %v320 = vrot.slane %v299, %v319
      %v321 = vlaneseq
      %v322 = vshrl.u32 %v321, 7
      %v323 = vsub.s32 5, %v322
      %v324 = vrot.slane %v299, %v323
      %v333 = vunpack.c.l.b16 %v276
      %v334 = vunpack.c.l.b16 %v277
      %v335 = vpack.c.b16 %v334, %v333
      %v357 = vunpack.c.l.b16 %v278
      %v358 = vunpack.c.h.b16 %v278
      %v359 = vunpack.c.l.b16 %v279
      %v360 = vunpack.c.h.b16 %v279
      %v361 = vunpack.c.l.b16 %v280
      %v362 = vunpack.c.h.b16 %v280
      %v363 = vunpack.c.l.b16 %v281
      %v364 = vunpack.c.h.b16 %v281
      %v365 = vunpack.c.l.b16 %v282
      %v366 = vunpack.c.h.b16 %v282
      %v367 = vunpack.c.l.b16 %v283
      %v368 = vunpack.c.h.b16 %v283
      %v369 = vunpack.c.l.b16 %v284
      %v370 = vunpack.c.h.b16 %v284
      %v371 = vunpack.c.l.b16 %v285
      %v372 = vunpack.c.h.b16 %v285
      %v373 = vunpack.c.l.b16 %v286
      %v374 = vunpack.c.h.b16 %v286
      %v375 = vunpack.c.l.b16 %v287
      %v376 = vunpack.c.h.b16 %v287
      %v377 = vunpack.c.l.b16 %v288
      %v378 = vunpack.c.h.b16 %v288
      %v379 = vunpack.c.l.b16 %v289
      %v380 = vunpack.c.h.b16 %v289
      %v381 = vunpack.c.l.b16 %v290
      %v382 = vunpack.c.h.b16 %v290
      %v383 = vunpack.c.l.b16 %v291
      %v384 = vunpack.c.h.b16 %v291
      %v385 = vunpack.c.l.b16 %v292
      %v386 = vunpack.c.h.b16 %v292
      %v387 = vunpack.c.l.b16 %v293
      %v388 = vunpack.c.h.b16 %v293
      %v389 = vunpack.c.l.b16 %v294
      %v390 = vunpack.c.h.b16 %v294
      %v391 = vunpack.c.l.b16 %v295
      %v392 = vunpack.c.h.b16 %v295
      %v393 = vunpack.c.l.b16 %v296
      %v394 = vunpack.c.h.b16 %v296
      %v395 = vunpack.c.l.b16 %v297
      %v396 = vunpack.c.h.b16 %v297
      %v397 = vunpack.c.l.b16 %v298
      %v398 = vunpack.c.h.b16 %v298
      %v399 = vpack.c.b16 %v363, %v357
      %v400 = vpack.c.b16 %v364, %v358
      %v401 = vpack.c.b16 %v365, %v359
      %v402 = vpack.c.b16 %v366, %v360
      %v403 = vpack.c.b16 %v367, %v361
      %v404 = vpack.c.b16 %v368, %v362
      %v405 = vpack.c.b16 %v375, %v369
      %v406 = vpack.c.b16 %v376, %v370
      %v407 = vpack.c.b16 %v377, %v371
      %v408 = vpack.c.b16 %v378, %v372
      %v409 = vpack.c.b16 %v379, %v373
      %v410 = vpack.c.b16 %v380, %v374
      %v411 = vpack.c.b16 %v387, %v381
      %v412 = vpack.c.b16 %v388, %v382
      %v413 = vpack.c.b16 %v389, %v383
      %v414 = vpack.c.b16 %v390, %v384
      %v415 = vpack.c.b16 %v391, %v385
      %v416 = vpack.c.b16 %v392, %v386
      %v417 = vpack.c.b16 %v393, %v393
      %v418 = vpack.c.b16 %v394, %v394
      %v419 = vpack.c.b16 %v395, %v395
      %v420 = vpack.c.b16 %v396, %v396
      %v421 = vpack.c.b16 %v397, %v397
      %v422 = vpack.c.b16 %v398, %v398
      %vm441 = vcmask 441344
      %v443 = vsel %vm441, %v335, 0
      %vm445 = vcmask 1042432
      %v447 = vsel %vm445, %v417, 0
      %v450 = vsel %vm445, %v418, 0
      %v453 = vsel %vm445, %v419, 0
      %v456 = vsel %vm445, %v420, 0
      %v459 = vsel %vm445, %v421, 0
      %v462 = vsel %vm445, %v422, 0
      %464 = vmatprep.subr.bf16.mxu0 %v400
      %465 = vmatpush1.bf16.msra.mxu0 %v399
      %466 = vmatprep.subr.bf16.mxu0 %v406
      %467 = vmatpush1.bf16.msra.mxu0 %v405
      %468 = vmatprep.subr.bf16.mxu0 %v412
      %469 = vmatpush1.bf16.msra.mxu0 %v411
      %470 = vmatprep.subr.bf16.mxu0 %v450
      %471 = vmatpush1.bf16.msra.mxu0 %v447
      %472 = vmatprep.subr.bf16.mxu0 0
      %473 = vmatpush1.bf16.msra.mxu0 0
      %474 = vmatprep.subr.bf16.mxu0 0
      %475 = vmatpush1.bf16.msra.mxu0 0
      %476 = vmatprep.subr.bf16.mxu0 0
      %477 = vmatpush1.bf16.msra.mxu0 0
      %478 = vmatprep.subr.bf16.mxu0 0
      %479 = vmatpush1.bf16.msra.mxu0 0
      %480 = vmatprep.subr.bf16.mxu0 0
      %481 = vmatpush1.bf16.msra.mxu0 0
      %482 = vmatprep.subr.bf16.mxu0 0
      %483 = vmatpush1.bf16.msra.mxu0 0
      %484 = vmatprep.subr.bf16.mxu0 0
      %485 = vmatpush1.bf16.msra.mxu0 0
      %486 = vmatprep.subr.bf16.mxu0 0
      %487 = vmatpush1.bf16.msra.mxu0 0
      %488 = vmatprep.subr.bf16.mxu0 0
      %489 = vmatpush1.bf16.msra.mxu0 0
      %490 = vmatprep.subr.bf16.mxu0 0
      %491 = vmatpush1.bf16.msra.mxu0 0
      %492 = vmatprep.subr.bf16.mxu0 0
      %493 = vmatpush1.bf16.msra.mxu0 0
      %494 = vmatprep.subr.bf16.mxu0 0
      %495 = vmatpush1.bf16.msra.mxu0 0
      %496 = vmatprep.mubr.bf16.mxu0 0
      %497 = vmatmul.mubr.bf16.gmra.mrb[0].mxu0 %v443
      %v498 = vpop.f32.mrb[0].mxu0
      %v499 = vadd.f32 %v304, %v498
      %v500 = vpop.f32.mrb[0].mxu0
      %v501 = vadd.f32 %v308, %v500
      %v502 = vpop.f32.mrb[0].mxu0
      %v503 = vadd.f32 %v304, %v502
      %v504 = vpop.f32.mrb[0].mxu0
      %v505 = vadd.f32 %v308, %v504
      %506 = vdwg.mxu0
      %507 = vmatprep.subr.bf16.mxu0 %v402
      %508 = vmatpush1.bf16.msra.mxu0 %v401
      %509 = vmatprep.subr.bf16.mxu0 %v408
      %510 = vmatpush1.bf16.msra.mxu0 %v407
      %511 = vmatprep.subr.bf16.mxu0 %v414
      %512 = vmatpush1.bf16.msra.mxu0 %v413
      %513 = vmatprep.subr.bf16.mxu0 %v456
      %514 = vmatpush1.bf16.msra.mxu0 %v453
      %515 = vmatprep.subr.bf16.mxu0 0
      %516 = vmatpush1.bf16.msra.mxu0 0
      %517 = vmatprep.subr.bf16.mxu0 0
      %518 = vmatpush1.bf16.msra.mxu0 0
      %519 = vmatprep.subr.bf16.mxu0 0
      %520 = vmatpush1.bf16.msra.mxu0 0
      %521 = vmatprep.subr.bf16.mxu0 0
      %522 = vmatpush1.bf16.msra.mxu0 0
      %523 = vmatprep.subr.bf16.mxu0 0
      %524 = vmatpush1.bf16.msra.mxu0 0
      %525 = vmatprep.subr.bf16.mxu0 0
      %526 = vmatpush1.bf16.msra.mxu0 0
      %527 = vmatprep.subr.bf16.mxu0 0
      %528 = vmatpush1.bf16.msra.mxu0 0
      %529 = vmatprep.subr.bf16.mxu0 0
      %530 = vmatpush1.bf16.msra.mxu0 0
      %531 = vmatprep.subr.bf16.mxu0 0
      %532 = vmatpush1.bf16.msra.mxu0 0
      %533 = vmatprep.subr.bf16.mxu0 0
      %534 = vmatpush1.bf16.msra.mxu0 0
      %535 = vmatprep.subr.bf16.mxu0 0
      %536 = vmatpush1.bf16.msra.mxu0 0
      %537 = vmatprep.subr.bf16.mxu0 0
      %538 = vmatpush1.bf16.msra.mxu0 0
      %539 = vmatprep.mubr.bf16.mxu0 0
      %540 = vmatmul.mubr.bf16.gmra.mrb[0].mxu0 %v443
      %v541 = vpop.f32.mrb[0].mxu0
      %v542 = vadd.f32 %v312, %v541
      %v543 = vpop.f32.mrb[0].mxu0
      %v544 = vadd.f32 %v316, %v543
      %v545 = vpop.f32.mrb[0].mxu0
      %v546 = vadd.f32 %v312, %v545
      %v547 = vpop.f32.mrb[0].mxu0
      %v548 = vadd.f32 %v316, %v547
      %549 = vdwg.mxu0
      %550 = vmatprep.subr.bf16.mxu0 %v404
      %551 = vmatpush1.bf16.msra.mxu0 %v403
      %552 = vmatprep.subr.bf16.mxu0 %v410
      %553 = vmatpush1.bf16.msra.mxu0 %v409
      %554 = vmatprep.subr.bf16.mxu0 %v416
      %555 = vmatpush1.bf16.msra.mxu0 %v415
      %556 = vmatprep.subr.bf16.mxu0 %v462
      %557 = vmatpush1.bf16.msra.mxu0 %v459
      %558 = vmatprep.subr.bf16.mxu0 0
      %559 = vmatpush1.bf16.msra.mxu0 0
      %560 = vmatprep.subr.bf16.mxu0 0
      %561 = vmatpush1.bf16.msra.mxu0 0
      %562 = vmatprep.subr.bf16.mxu0 0
      %563 = vmatpush1.bf16.msra.mxu0 0
      %564 = vmatprep.subr.bf16.mxu0 0
      %565 = vmatpush1.bf16.msra.mxu0 0
      %566 = vmatprep.subr.bf16.mxu0 0
      %567 = vmatpush1.bf16.msra.mxu0 0
      %568 = vmatprep.subr.bf16.mxu0 0
      %569 = vmatpush1.bf16.msra.mxu0 0
      %570 = vmatprep.subr.bf16.mxu0 0
      %571 = vmatpush1.bf16.msra.mxu0 0
      %572 = vmatprep.subr.bf16.mxu0 0
      %573 = vmatpush1.bf16.msra.mxu0 0
      %574 = vmatprep.subr.bf16.mxu0 0
      %575 = vmatpush1.bf16.msra.mxu0 0
      %576 = vmatprep.subr.bf16.mxu0 0
      %577 = vmatpush1.bf16.msra.mxu0 0
      %578 = vmatprep.subr.bf16.mxu0 0
      %579 = vmatpush1.bf16.msra.mxu0 0
      %580 = vmatprep.subr.bf16.mxu0 0
      %581 = vmatpush1.bf16.msra.mxu0 0
      %582 = vmatprep.mubr.bf16.mxu0 0
      %583 = vmatmul.mubr.bf16.gmra.mrb[0].mxu0 %v443
      %v584 = vpop.f32.mrb[0].mxu0
      %v585 = vadd.f32 %v320, %v584
      %v586 = vpop.f32.mrb[0].mxu0
      %v587 = vadd.f32 %v324, %v586
      %v588 = vpop.f32.mrb[0].mxu0
      %v589 = vadd.f32 %v320, %v588
      %v590 = vpop.f32.mrb[0].mxu0
      %v591 = vadd.f32 %v324, %v590
      %592 = vdwg.mxu0
      %v593 = vmax.f32 %v499, 0.0
      %v594 = vmax.f32 %v501, 0.0
      %v595 = vmax.f32 %v542, 0.0
      %v596 = vmax.f32 %v544, 0.0
      %v597 = vmax.f32 %v585, 0.0
      %v598 = vmax.f32 %v587, 0.0
      %v599 = vmax.f32 %v503, 0.0
      %v600 = vmax.f32 %v505, 0.0
      %v601 = vmax.f32 %v546, 0.0
      %v602 = vmax.f32 %v548, 0.0
      %v603 = vmax.f32 %v589, 0.0
      %v604 = vmax.f32 %v591, 0.0
      %v605 = vld [vmem:[%s262] sm:$0xff]
      %v606 = vld [vmem:[%s262 + $0x8] sm:$0xff]
      %v607 = vsub.f32 1.0, %v605
      %v608 = vsub.f32 1.0, %v606
      %610 = vset.pattern.permute.xlu0 0
      %611 = vperm.xlu0 %610, %v607
      %v612 = vpop.permute.xlu0 %611
      %615 = vset.pattern.permute.xlu0 0
      %616 = vperm.xlu0 %615, %v608
      %v617 = vpop.permute.xlu0 %616
      %v619 = vmul.f32 %v593, %v612
      %v620 = vmul.f32 %v594, %v612
      %v621 = vmul.f32 %v595, %v612
      %v622 = vmul.f32 %v596, %v612
      %v623 = vmul.f32 %v597, %v612
      %v624 = vmul.f32 %v598, %v612
      %v625 = vmul.f32 %v599, %v617
      %v626 = vmul.f32 %v600, %v617
      %v627 = vmul.f32 %v601, %v617
      %v628 = vmul.f32 %v602, %v617
      %v629 = vmul.f32 %v603, %v617
      %v630 = vmul.f32 %v604, %v617
      %v631 = vpack.c.bf16 %v625, %v619
      %v632 = vpack.c.bf16 %v626, %v620
      %v633 = vpack.c.bf16 %v627, %v621
      %v634 = vpack.c.bf16 %v628, %v622
      %v635 = vpack.c.bf16 %v629, %v623
      %v636 = vpack.c.bf16 %v630, %v624
      %v643 = vunpack.c.l.b16 %v631
      %v644 = vunpack.c.l.b16 %v632
      %v645 = vunpack.c.l.b16 %v633
      %v646 = vunpack.c.l.b16 %v634
      %v647 = vunpack.c.l.b16 %v635
      %v648 = vunpack.c.l.b16 %v636
      %v649 = vunpack.c.h.b16 %v631
      %v650 = vunpack.c.h.b16 %v632
      %v651 = vunpack.c.h.b16 %v633
      %v652 = vunpack.c.h.b16 %v634
      %v653 = vunpack.c.h.b16 %v635
      %v654 = vunpack.c.h.b16 %v636
      %v655 = vpack.c.b16 %v644, %v643
      %v656 = vpack.c.b16 %v646, %v645
      %v657 = vpack.c.b16 %v648, %v647
      %v658 = vpack.c.b16 %v650, %v649
      %v659 = vpack.c.b16 %v652, %v651
      %v660 = vpack.c.b16 %v654, %v653
      %667 = vst [vmem:[%s273] sm:$0xff] %v655
      %668 = vst [vmem:[%s273 + $0x8] sm:$0xff] %v656
      %669 = vst [vmem:[%s273 + $0x10] sm:$0xff] %v657
      %670 = vst [vmem:[%s273 + $0x18] sm:$0xff] %v658
      %671 = vst [vmem:[%s273 + $0x20] sm:$0xff] %v659
      %672 = vst [vmem:[%s273 + $0x28] sm:$0xff] %v660
      %s673 = smul.u32 2, %s20
      %p674 = scmp.lt.s32.totalorder %s19, 1
      %s675 = scalar_select %p674, %s19, 1
      %p676 = scmp.lt.s32.totalorder %s673, 3
      %s677 = scalar_select %p676, %s673, 3
      %s678 = smul.addr %s677, 6
      %s679 = smul.addr %s675, 24
      %s680 = sadd.s32 %s678, %s679
      %s681 = smul.addr %s680, 4
      %s682 = scalar_lea.vmem %s4, %s681
      // Predicated region
      $region37: #{subsample_forward.3} parent=35 // pred_check
        %p683 = pneg %p145
      $region38: #{subsample_forward.3} parent=35 // pred_check_branch
        %685 = sbr.rel (%p683) target = $region40
      $region39: #{subsample_forward.3} parent=35 // pred_region
        %s686 = smul.u32 2, %s20
      $region40: #{subsample_forward.3} parent=35 // pred_fallthru
        _
    $region36: #{subsample_forward.3} parent=5 // pred_fallthru
      _
    %p687 = scmp.le.s32.totalorder 2, %s10
    // Predicated region
    $region41: #{subsample_forward.3} parent=5 // pred_check
      %p688 = pneg %p687
    $region42: #{subsample_forward.3} parent=5 // pred_check_branch
      %690 = sbr.rel (%p688) target = $region44
    $region43: #{subsample_forward.3} parent=5 // pred_region
      %s691 = ssub.s32 %s10, 2
      // Predicated region
      $region45: #{subsample_forward.3} parent=43 // pred_check
        %p692 = pneg %p151
      $region46: #{subsample_forward.3} parent=43 // pred_check_branch
        %694 = sbr.rel (%p692) target = $region48
      $region47: #{subsample_forward.3} parent=43 // pred_region
        %s695 = smul.u32 2, %s22
        %p696 = scmp.lt.s32.totalorder %s21, 1
        %s697 = scalar_select %p696, %s21, 1
        %p698 = scmp.lt.s32.totalorder %s695, 3
        %s699 = scalar_select %p698, %s695, 3
        %s700 = smul.addr %s699, 6
        %s701 = smul.addr %s697, 24
        %s702 = sadd.s32 %s700, %s701
        %s703 = smul.addr %s702, 4
        %s704 = scalar_lea.vmem %s4, %s703
      $region48: #{subsample_forward.3} parent=43 // pred_fallthru
        _
    $region44: #{subsample_forward.3} parent=5 // pred_fallthru
      _
  $region6: #{subsample_forward.3} parent=0 // loop_footer
    %s14 = sadd.s32 1, %s10
  $region7: #{subsample_forward.3} parent=0 // loop_footer_branch
    %9 = sbr.rel target = $region3
  $region8: #{subsample_forward.3} parent=0 // loop_exit
    _

// kernel: subsample_forward.4
$region0: #{subsample_forward.4}
  #allocation0 [shape = 'u32[]', space=smem, size = 0x4, offset = 0x4, fixed_abs, tag = 'smem constant byte address 0x4 - core index']
  #allocation1 [shape = 'u32[144,128]{1,0:T(1,128)}', space=vmem, size = 0x12000, scoped, tag = 'internal scratch']
  %s0 = inlined_call_operand.vmem [shape: bf16[2,32,8,96], index: 0, kind: input, shape index: {}, may-alias: {0,1}]
  %s1 = inlined_call_operand.vmem [shape: bf16[2,32,8,96], index: 1, kind: input, shape index: {}, may-alias: {0,1}]
  %s2 = inlined_call_operand.vmem [shape: bf16[3,96,32], index: 2, kind: input, shape index: {}]
  %s3 = inlined_call_operand.vmem [shape: f32[1,32], index: 3, kind: input, shape index: {}]
  %s4 = inlined_call_operand.vmem [shape: bf16[2,64,32], index: 4, kind: output, shape index: {}]
  %s5 = sld [smem:[#allocation0]]
  $region49: #{subsample_forward.4} parent=0
    _
  %s7 = ssub.s32 1, %s5
  %s8 = scalar_select 0, %s7, %s5
  loop: start=0, step=1, limit=4
  $region2: #{subsample_forward.4} parent=0 // loop_pre_header
    _
  $region3: #{subsample_forward.4} parent=0 // loop_header
    %s10 = sphi 0, %s14
    %p11 = scmp.ge.s32.totalorder %s10, 4
    %s17 = sphi 0, %s29
    %s18 = sphi 0, %s25
    %s19 = sphi 0, %s17
    %s20 = sphi 0, %s18
    %s21 = sphi 0, %s19
    %s22 = sphi 0, %s20
    %s34 = sphi 0, %s36
    %s37 = sphi 0, %s34
    %s38 = sphi 0, %s37
    %s54 = sphi 0, %s38
    %s66 = sphi 0, %s68
    %s69 = sphi 0, %s66
    %s70 = sphi 0, %s69
    %s86 = sphi 0, %s70
    %s90 = sphi 0, %s90
    %s92 = sphi 0, %s90
    %s93 = sphi 0, %s92
    %s107 = sphi 0, %s93
    %s111 = sphi 0, %s111
    %s113 = sphi 0, %s111
    %s114 = sphi 0, %s113
    %s128 = sphi 0, %s114
    %s136 = sphi 0, %s138
    %s139 = sphi 0, %s136
    %s140 = sphi 0, %s139
    %s156 = sphi 0, %s140
  $region4: #{subsample_forward.4} parent=0 // loop_header_branch
    %13 = sbr.rel (%p11) target = $region8
  $region5: #{subsample_forward.4} parent=0 // loop_body
    %s15 = ssub.s32 %s10, 1
    %s16 = ssub.s32 %s10, 2
    %s23 = sadd.s32 1, %s18
    %p24 = scmp.ge.s32.totalorder %s23, 1
    %s25 = scalar_select %p24, 0, %s23
    %s26 = sadd.s32 1, %s17
    %s27 = scalar_select %p24, %s26, %s17
    %p28 = scmp.ge.s32.totalorder %s27, 2
    %s29 = scalar_select %p28, 0, %s27
    %s30 = ssub.s32 %s17, %s29
    %s31 = ssub.s32 %s18, %s25
    %s32 = sor.u32 %s30, %s31
    %p33 = scmp.eq.s32.totalorder %s32, 0
    %s35 = sadd.s32 %s34, 1
    %s36 = scalar_select %p33, %s34, %s35
    %p39 = pneg %p33
    %p40 = scmp.eq.s32.totalorder %s10, 1
    %p41 = por %p39, %p40
    %p42 = scmp.ne.s32.totalorder %s34, %s37
    %p43 = scmp.eq.s32.totalorder %s10, 0
    %p44 = por %p42, %p43
    %p45 = scmp.ne.s32.totalorder %s34, %s37
    %p46 = scmp.eq.s32.totalorder %s15, 1
    %p47 = por %p45, %p46
    %p48 = scmp.ne.s32.totalorder %s37, %s38
    %p49 = scmp.eq.s32.totalorder %s15, 0
    %p50 = por %p48, %p49
    %p51 = scmp.ne.s32.totalorder %s37, %s38
    %p52 = scmp.eq.s32.totalorder %s16, 1
    %p53 = por %p51, %p52
    %p55 = scmp.ne.s32.totalorder %s38, %s54
    %p56 = scmp.eq.s32.totalorder %s16, 0
    %p57 = por %p55, %p56
    %s58 = sadd.s32 %s18, 1
    %s59 = smul.u32 %s58, 16
    %s60 = sadd.s32 %s25, 1
    %s61 = smul.u32 %s60, 16
    %s62 = ssub.s32 %s17, %s29
    %s63 = ssub.s32 %s59, %s61
    %s64 = sor.u32 %s62, %s63
    %p65 = scmp.eq.s32.totalorder %s64, 0
    %s67 = sadd.s32 %s66, 1
    %s68 = scalar_select %p65, %s66, %s67
    %p71 = pneg %p65
    %p72 = scmp.eq.s32.totalorder %s10, 1
    %p73 = por %p71, %p72
    %p74 = scmp.ne.s32.totalorder %s66, %s69
    %p75 = scmp.eq.s32.totalorder %s10, 0
    %p76 = por %p74, %p75
    %p77 = scmp.ne.s32.totalorder %s66, %s69
    %p78 = scmp.eq.s32.totalorder %s15, 1
    %p79 = por %p77, %p78
    %p80 = scmp.ne.s32.totalorder %s69, %s70
    %p81 = scmp.eq.s32.totalorder %s15, 0
    %p82 = por %p80, %p81
    %p83 = scmp.ne.s32.totalorder %s69, %s70
    %p84 = scmp.eq.s32.totalorder %s16, 1
    %p85 = por %p83, %p84
    %p87 = scmp.ne.s32.totalorder %s70, %s86
    %p88 = scmp.eq.s32.totalorder %s16, 0
    %p89 = por %p87, %p88
    %s91 = sadd.s32 %s90, 1
    %p94 = scmp.eq.s32.totalorder %s10, 1
    %p95 = scmp.ne.s32.totalorder %s90, %s92
    %p96 = scmp.eq.s32.totalorder %s10, 0
    %p97 = por %p95, %p96
    %p98 = scmp.ne.s32.totalorder %s90, %s92
    %p99 = scmp.eq.s32.totalorder %s15, 1
    %p100 = por %p98, %p99
    %p101 = scmp.ne.s32.totalorder %s92, %s93
    %p102 = scmp.eq.s32.totalorder %s15, 0
    %p103 = por %p101, %p102
    %p104 = scmp.ne.s32.totalorder %s92, %s93
    %p105 = scmp.eq.s32.totalorder %s16, 1
    %p106 = por %p104, %p105
    %p108 = scmp.ne.s32.totalorder %s93, %s107
    %p109 = scmp.eq.s32.totalorder %s16, 0
    %p110 = por %p108, %p109
    %s112 = sadd.s32 %s111, 1
    %p115 = scmp.eq.s32.totalorder %s10, 1
    %p116 = scmp.ne.s32.totalorder %s111, %s113
    %p117 = scmp.eq.s32.totalorder %s10, 0
    %p118 = por %p116, %p117
    %p119 = scmp.ne.s32.totalorder %s111, %s113
    %p120 = scmp.eq.s32.totalorder %s15, 1
    %p121 = por %p119, %p120
    %p122 = scmp.ne.s32.totalorder %s113, %s114
    %p123 = scmp.eq.s32.totalorder %s15, 0
    %p124 = por %p122, %p123
    %p125 = scmp.ne.s32.totalorder %s113, %s114
    %p126 = scmp.eq.s32.totalorder %s16, 1
    %p127 = por %p125, %p126
    %p129 = scmp.ne.s32.totalorder %s114, %s128
    %p130 = scmp.eq.s32.totalorder %s16, 0
    %p131 = por %p129, %p130
    %s132 = ssub.s32 %s17, %s29
    %s133 = ssub.s32 %s18, %s25
    %s134 = sor.u32 %s132, %s133
    %p135 = scmp.eq.s32.totalorder %s134, 0
    %s137 = sadd.s32 %s136, 1
    %s138 = scalar_select %p135, %s136, %s137
    %p141 = pneg %p135
    %p142 = scmp.eq.s32.totalorder %s10, 1
    %p143 = por %p141, %p142
    %p144 = scmp.ne.s32.totalorder %s136, %s139
    %p145 = scmp.eq.s32.totalorder %s10, 0
    %p146 = por %p144, %p145
    %p147 = scmp.ne.s32.totalorder %s136, %s139
    %p148 = scmp.eq.s32.totalorder %s15, 1
    %p149 = por %p147, %p148
    %p150 = scmp.ne.s32.totalorder %s139, %s140
    %p151 = scmp.eq.s32.totalorder %s15, 0
    %p152 = por %p150, %p151
    %p153 = scmp.ne.s32.totalorder %s139, %s140
    %p154 = scmp.eq.s32.totalorder %s16, 1
    %p155 = por %p153, %p154
    %p157 = scmp.ne.s32.totalorder %s140, %s156
    %p158 = scmp.eq.s32.totalorder %s16, 0
    %p159 = por %p157, %p158
    %p160 = scmp.le.s32.totalorder 1, %s10
    %p161 = scmp.lt.s32.totalorder %s10, 3
    %p162 = pnand %p160, %p161
    %p163 = pneg %p162
    // Predicated region
    $region9: #{subsample_forward.4} parent=5 // pred_check
      _
    $region10: #{subsample_forward.4} parent=5 // pred_check_branch
      %165 = sbr.rel (%p162) target = $region12
    $region11: #{subsample_forward.4} parent=5 // pred_region
      %s166 = ssub.s32 %s10, 1
      // Predicated region
      $region13: #{subsample_forward.4} parent=11 // pred_check
        %p167 = pneg %p103
      $region14: #{subsample_forward.4} parent=11 // pred_check_branch
        %169 = sbr.rel (%p167) target = $region16
      $region15: #{subsample_forward.4} parent=11 // pred_region
        _
      $region16: #{subsample_forward.4} parent=11 // pred_fallthru
        _
      // Predicated region
      $region17: #{subsample_forward.4} parent=11 // pred_check
        %p170 = pneg %p124
      $region18: #{subsample_forward.4} parent=11 // pred_check_branch
        %172 = sbr.rel (%p170) target = $region20
      $region19: #{subsample_forward.4} parent=11 // pred_region
        _
      $region20: #{subsample_forward.4} parent=11 // pred_fallthru
        _
    $region12: #{subsample_forward.4} parent=5 // pred_fallthru
      _
    %p173 = scmp.lt.s32.totalorder %s10, 2
    // Predicated region
    $region21: #{subsample_forward.4} parent=5 // pred_check
      %p174 = pneg %p173
    $region22: #{subsample_forward.4} parent=5 // pred_check_branch
      %176 = sbr.rel (%p174) target = $region24
    $region23: #{subsample_forward.4} parent=5 // pred_region
      // Predicated region
      $region25: #{subsample_forward.4} parent=23 // pred_check
        %p177 = pneg %p44
      $region26: #{subsample_forward.4} parent=23 // pred_check_branch
        %179 = sbr.rel (%p177) target = $region28
      $region27: #{subsample_forward.4} parent=23 // pred_region
        %s180 = smul.u32 16, %s18
        %p181 = scmp.lt.s32.totalorder %s17, 1
        %s182 = scalar_select %p181, %s17, 1
        %p183 = scmp.lt.s32.totalorder %s180, 31
        %s184 = scalar_select %p183, %s180, 31
        %s185 = smul.addr %s182, 32
        %s186 = sadd.s32 %s184, %s185
        %s187 = smul.addr %s186, 4
        %s188 = scalar_lea.vmem %s0, %s187
        %s189 = smul.u32 16, %s18
      $region28: #{subsample_forward.4} parent=23 // pred_fallthru
        _
      // Predicated region
      $region29: #{subsample_forward.4} parent=23 // pred_check
        %p190 = pneg %p76
      $region30: #{subsample_forward.4} parent=23 // pred_check_branch
        %192 = sbr.rel (%p190) target = $region32
      $region31: #{subsample_forward.4} parent=23 // pred_region
        %s193 = sadd.s32 %s18, 1
        %s194 = smul.u32 %s193, 16
        %p195 = scmp.lt.s32.totalorder %s17, 1
        %s196 = scalar_select %p195, %s17, 1
        %p197 = scmp.lt.s32.totalorder %s194, 31
        %s198 = scalar_select %p197, %s194, 31
        %s199 = smul.addr %s196, 32
        %s200 = sadd.s32 %s198, %s199
        %s201 = smul.addr %s200, 4
        %s202 = scalar_lea.vmem %s1, %s201
        %s203 = sadd.s32 %s18, 1
        %s204 = smul.u32 %s203, 16
      $region32: #{subsample_forward.4} parent=23 // pred_fallthru
        _
    $region24: #{subsample_forward.4} parent=5 // pred_fallthru
      _
    %p205 = scmp.le.s32.totalorder 1, %s10
    %p206 = scmp.lt.s32.totalorder %s10, 3
    %p207 = pnand %p205, %p206
    %p208 = pneg %p207
    // Predicated region
    $region33: #{subsample_forward.4} parent=5 // pred_check
      _
    $region34: #{subsample_forward.4} parent=5 // pred_check_branch
      %210 = sbr.rel (%p207) target = $region36
    $region35: #{subsample_forward.4} parent=5 // pred_region
      %s211 = ssub.s32 %s10, 1
      %s212 = smul.u32 16, %s20
      %p213 = scmp.lt.s32.totalorder %s19, 1
      %s214 = scalar_select %p213, %s19, 1
      %p215 = scmp.lt.s32.totalorder %s212, 31
      %s216 = scalar_select %p215, %s212, 31
      %s217 = smul.addr %s214, 32
      %s218 = sadd.s32 %s216, %s217
      %s219 = smul.addr %s218, 4
      %s220 = scalar_lea.vmem %s0, %s219
      %p221 = pneg %p50
      %p222 = pneg %p47
      %s223 = sadd.s32 %s20, 1
      %s224 = smul.u32 %s223, 16
      %p225 = scmp.lt.s32.totalorder %s19, 1
      %s226 = scalar_select %p225, %s19, 1
      %p227 = scmp.lt.s32.totalorder %s224, 31
      %s228 = scalar_select %p227, %s224, 31
      %s229 = smul.addr %s226, 32
      %s230 = sadd.s32 %s228, %s229
      %s231 = smul.addr %s230, 4
      %s232 = scalar_lea.vmem %s1, %s231
      %p233 = pneg %p82
      %p234 = pneg %p79
      %p235 = pneg %p103
      %p236 = pneg %p100
      %p237 = pneg %p124
      %p238 = pneg %p121
      %p239 = pneg %p152
      %p240 = pneg %p149
      %s241 = smul.u32 8, %s20
      %p242 = scmp.lt.s32.totalorder %s19, 1
      %s243 = scalar_select %p242, %s19, 1
      %p244 = scmp.lt.s32.totalorder %s241, 7
      %s245 = scalar_select %p244, %s241, 7
      %s246 = smul.addr %s243, 8
      %s247 = sadd.s32 %s245, %s246
      %s248 = smul.addr %s247, 4
      %s249 = scalar_lea.vmem %s4, %s248
      %s250 = smul.u32 16, %s20
      %p251 = scmp.lt.s32.totalorder %s19, 1
      %s252 = scalar_select %p251, %s19, 1
      %p253 = scmp.lt.s32.totalorder %s250, 31
      %s254 = scalar_select %p253, %s250, 31
      %s255 = smul.addr %s252, 32
      %s256 = sadd.s32 %s254, %s255
      %s257 = smul.addr %s256, 4
      %s258 = scalar_lea.vmem %s0, %s257
      %s259 = smul.u32 16, %s20
      %s260 = sadd.s32 %s20, 1
      %s261 = smul.u32 %s260, 16
      %p262 = scmp.lt.s32.totalorder %s19, 1
      %s263 = scalar_select %p262, %s19, 1
      %p264 = scmp.lt.s32.totalorder %s261, 31
      %s265 = scalar_select %p264, %s261, 31
      %s266 = smul.addr %s263, 32
      %s267 = sadd.s32 %s265, %s266
      %s268 = smul.addr %s267, 4
      %s269 = scalar_lea.vmem %s1, %s268
      %s270 = sadd.s32 %s20, 1
      %s271 = smul.u32 %s270, 16
      %s272 = smul.u32 8, %s20
      %p273 = scmp.lt.s32.totalorder %s19, 1
      %s274 = scalar_select %p273, %s19, 1
      %p275 = scmp.lt.s32.totalorder %s272, 7
      %s276 = scalar_select %p275, %s272, 7
      %s277 = smul.addr %s274, 8
      %s278 = sadd.s32 %s276, %s277
      %s279 = smul.addr %s278, 4
      %s280 = scalar_lea.vmem %s4, %s279
      %s281 = smul.u32 8, %s20
      %v283 = vld [vmem:[%s258] sm:$0xf]
      %v284 = vld [vmem:[%s258 + $0x4] sm:$0xf]
      %v285 = vld [vmem:[%s258 + $0x8] sm:$0xf]
      %v286 = vld [vmem:[%s258 + $0xc] sm:$0xf]
      %v287 = vld [vmem:[%s258 + $0x10] sm:$0xf]
      %v288 = vld [vmem:[%s258 + $0x14] sm:$0xf]
      %v289 = vld [vmem:[%s258 + $0x18] sm:$0xf]
      %v290 = vld [vmem:[%s258 + $0x1c] sm:$0xf]
      %v291 = vld [vmem:[%s258 + $0x20] sm:$0xf]
      %v292 = vld [vmem:[%s258 + $0x24] sm:$0xf]
      %v293 = vld [vmem:[%s258 + $0x28] sm:$0xf]
      %v294 = vld [vmem:[%s258 + $0x2c] sm:$0xf]
      %v295 = vld [vmem:[%s258 + $0x30] sm:$0xf]
      %v296 = vld [vmem:[%s258 + $0x34] sm:$0xf]
      %v297 = vld [vmem:[%s258 + $0x38] sm:$0xf]
      %v298 = vld [vmem:[%s258 + $0x3c] sm:$0xf]
      %v299 = vld [vmem:[%s269] sm:$0xf]
      %v300 = vld [vmem:[%s2] sm:$0xf]
      %v301 = vld [vmem:[%s2 + $0x4] sm:$0xf]
      %v302 = vld [vmem:[%s2 + $0x8] sm:$0xf]
      %v303 = vld [vmem:[%s2 + $0xc] sm:$0xf]
      %v304 = vld [vmem:[%s2 + $0x10] sm:$0xf]
      %v305 = vld [vmem:[%s2 + $0x14] sm:$0xf]
      %v306 = vld [vmem:[%s2 + $0x18] sm:$0xf]
      %v307 = vld [vmem:[%s2 + $0x1c] sm:$0xf]
      %v308 = vld [vmem:[%s2 + $0x20] sm:$0xf]
      %v309 = vld [vmem:[%s2 + $0x24] sm:$0xf]
      %v310 = vld [vmem:[%s2 + $0x28] sm:$0xf]
      %v311 = vld [vmem:[%s2 + $0x2c] sm:$0xf]
      %s312 = scalar_lea.vmem %s2, 48
      %v313 = vld [vmem:[%s312] sm:$0xf]
      %v314 = vld [vmem:[%s312 + $0x4] sm:$0xf]
      %v315 = vld [vmem:[%s312 + $0x8] sm:$0xf]
      %v316 = vld [vmem:[%s312 + $0xc] sm:$0xf]
      %v317 = vld [vmem:[%s312 + $0x10] sm:$0xf]
      %v318 = vld [vmem:[%s312 + $0x14] sm:$0xf]
      %v319 = vld [vmem:[%s312 + $0x18] sm:$0xf]
      %v320 = vld [vmem:[%s312 + $0x1c] sm:$0xf]
      %v321 = vld [vmem:[%s312 + $0x20] sm:$0xf]
      %v322 = vld [vmem:[%s312 + $0x24] sm:$0xf]
      %v323 = vld [vmem:[%s312 + $0x28] sm:$0xf]
      %v324 = vld [vmem:[%s312 + $0x2c] sm:$0xf]
      %v333 = vunpack.c.l.b16 %v284
      %v334 = vunpack.c.l.b16 %v286
      %v335 = vunpack.c.l.b16 %v288
      %v336 = vunpack.c.l.b16 %v290
      %v337 = vunpack.c.l.b16 %v292
      %v338 = vunpack.c.l.b16 %v294
      %v339 = vunpack.c.l.b16 %v296
      %v340 = vunpack.c.l.b16 %v298
      %v341 = vpack.c.b16 %v334, %v333
      %v342 = vpack.c.b16 %v336, %v335
      %v343 = vpack.c.b16 %v338, %v337
      %v344 = vpack.c.b16 %v340, %v339
      %v357 = vunpack.c.l.b16 %v313
      %v358 = vunpack.c.l.b16 %v314
      %v359 = vunpack.c.l.b16 %v315
      %v360 = vunpack.c.l.b16 %v316
      %v361 = vunpack.c.l.b16 %v317
      %v362 = vunpack.c.l.b16 %v318
      %v363 = vunpack.c.l.b16 %v319
      %v364 = vunpack.c.l.b16 %v320
      %v365 = vunpack.c.l.b16 %v321
      %v366 = vunpack.c.l.b16 %v322
      %v367 = vunpack.c.l.b16 %v323
      %v368 = vunpack.c.l.b16 %v324
      %v369 = vpack.c.b16 %v358, %v357
      %v370 = vpack.c.b16 %v360, %v359
      %v371 = vpack.c.b16 %v362, %v361
      %v372 = vpack.c.b16 %v364, %v363
      %v373 = vpack.c.b16 %v366, %v365
      %v374 = vpack.c.b16 %v368, %v367
      %vm381 = vcmask 785408
      %v383 = vsel %vm381, %v341, 0
      %v386 = vsel %vm381, %v342, 0
      %v389 = vsel %vm381, %v343, 0
      %v392 = vsel %vm381, %v344, 0
      %394 = vmatprep.subr.bf16.mxu0 0
      %395 = vmatpush1.bf16.msra.mxu0 %v369
      %396 = vmatprep.subr.bf16.mxu0 0
      %397 = vmatpush1.bf16.msra.mxu0 %v370
      %398 = vmatprep.subr.bf16.mxu0 0
      %399 = vmatpush1.bf16.msra.mxu0 %v371
      %400 = vmatprep.subr.bf16.mxu0 0
      %401 = vmatpush1.bf16.msra.mxu0 %v372
      %402 = vmatprep.subr.bf16.mxu0 0
      %403 = vmatpush1.bf16.msra.mxu0 %v373
      %404 = vmatprep.subr.bf16.mxu0 0
      %405 = vmatpush1.bf16.msra.mxu0 %v374
      %406 = vmatprep.subr.bf16.mxu0 0
      %407 = vmatpush1.bf16.msra.mxu0 0
      %408 = vmatprep.subr.bf16.mxu0 0
      %409 = vmatpush1.bf16.msra.mxu0 0
      %410 = vmatprep.subr.bf16.mxu0 0
      %411 = vmatpush1.bf16.msra.mxu0 0
      %412 = vmatprep.subr.bf16.mxu0 0
      %413 = vmatpush1.bf16.msra.mxu0 0
      %414 = vmatprep.subr.bf16.mxu0 0
      %415 = vmatpush1.bf16.msra.mxu0 0
      %416 = vmatprep.subr.bf16.mxu0 0
      %417 = vmatpush1.bf16.msra.mxu0 0
      %418 = vmatprep.subr.bf16.mxu0 0
      %419 = vmatpush1.bf16.msra.mxu0 0
      %420 = vmatprep.subr.bf16.mxu0 0
      %421 = vmatpush1.bf16.msra.mxu0 0
      %422 = vmatprep.subr.bf16.mxu0 0
      %423 = vmatpush1.bf16.msra.mxu0 0
      %424 = vmatprep.subr.bf16.mxu0 0
      %425 = vmatpush1.bf16.msra.mxu0 0
      %426 = vmatprep.mubr.bf16.mxu0 0
      %427 = vmatmul.mubr.bf16.gmra.mrb[0].mxu0 %v383
      %v428 = vpop.f32.mrb[0].mxu0
      %v429 = vadd.f32 0.0, %v428
      %v430 = vpop.f32.mrb[0].mxu0
      %v431 = vpop.f32.mrb[0].mxu0
      %v432 = vadd.f32 0.0, %v431
      %v433 = vpop.f32.mrb[0].mxu0
      %434 = vmatprep.mubr.bf16.mxu0 0
      %435 = vmatmul.mubr.bf16.gmra.mrb[0].mxu0 %v386
      %v436 = vpop.f32.mrb[0].mxu0
      %v437 = vadd.f32 0.0, %v436
      %v438 = vpop.f32.mrb[0].mxu0
      %v439 = vpop.f32.mrb[0].mxu0
      %v440 = vadd.f32 0.0, %v439
      %v441 = vpop.f32.mrb[0].mxu0
      %442 = vmatprep.mubr.bf16.mxu0 0
      %443 = vmatmul.mubr.bf16.gmra.mrb[0].mxu0 %v389
      %v444 = vpop.f32.mrb[0].mxu0
      %v445 = vadd.f32 0.0, %v444
      %v446 = vpop.f32.mrb[0].mxu0
      %v447 = vpop.f32.mrb[0].mxu0
      %v448 = vadd.f32 0.0, %v447
      %v449 = vpop.f32.mrb[0].mxu0
      %450 = vmatprep.mubr.bf16.mxu0 0
      %451 = vmatmul.mubr.bf16.gmra.mrb[0].mxu0 %v392
      %v452 = vpop.f32.mrb[0].mxu0
      %v453 = vadd.f32 0.0, %v452
      %v454 = vpop.f32.mrb[0].mxu0
      %v455 = vpop.f32.mrb[0].mxu0
      %v456 = vadd.f32 0.0, %v455
      %v457 = vpop.f32.mrb[0].mxu0
      %458 = vdwg.mxu0
      %v467 = vunpack.c.l.b16 %v283
      %v468 = vunpack.c.l.b16 %v285
      %v469 = vunpack.c.l.b16 %v287
      %v470 = vunpack.c.l.b16 %v289
      %v471 = vunpack.c.l.b16 %v291
      %v472 = vunpack.c.l.b16 %v293
      %v473 = vunpack.c.l.b16 %v295
      %v474 = vunpack.c.l.b16 %v297
      %v475 = vpack.c.b16 %v468, %v467
      %v476 = vpack.c.b16 %v470, %v469
      %v477 = vpack.c.b16 %v472, %v471
      %v478 = vpack.c.b16 %v474, %v473
      %v491 = vunpack.c.l.b16 %v300
      %v492 = vunpack.c.l.b16 %v301
      %v493 = vunpack.c.l.b16 %v302
      %v494 = vunpack.c.l.b16 %v303
      %v495 = vunpack.c.l.b16 %v304
      %v496 = vunpack.c.l.b16 %v305
      %v497 = vunpack.c.l.b16 %v306
      %v498 = vunpack.c.l.b16 %v307
      %v499 = vunpack.c.l.b16 %v308
      %v500 = vunpack.c.l.b16 %v309
      %v501 = vunpack.c.l.b16 %v310
      %v502 = vunpack.c.l.b16 %v311
      %v503 = vpack.c.b16 %v492, %v491
      %v504 = vpack.c.b16 %v494, %v493
      %v505 = vpack.c.b16 %v496, %v495
      %v506 = vpack.c.b16 %v498, %v497
      %v507 = vpack.c.b16 %v500, %v499
      %v508 = vpack.c.b16 %v502, %v501
      %v516 = vsel %vm381, %v475, 0
      %v519 = vsel %vm381, %v476, 0
      %v522 = vsel %vm381, %v477, 0
      %v525 = vsel %vm381, %v478, 0
      %527 = vmatprep.subr.bf16.mxu0 0
      %528 = vmatpush1.bf16.msra.mxu0 %v503
      %529 = vmatprep.subr.bf16.mxu0 0
      %530 = vmatpush1.bf16.msra.mxu0 %v504
      %531 = vmatprep.subr.bf16.mxu0 0
      %532 = vmatpush1.bf16.msra.mxu0 %v505
      %533 = vmatprep.subr.bf16.mxu0 0
      %534 = vmatpush1.bf16.msra.mxu0 %v506
      %535 = vmatprep.subr.bf16.mxu0 0
      %536 = vmatpush1.bf16.msra.mxu0 %v507
      %537 = vmatprep.subr.bf16.mxu0 0
      %538 = vmatpush1.bf16.msra.mxu0 %v508
      %539 = vmatprep.subr.bf16.mxu0 0
      %540 = vmatpush1.bf16.msra.mxu0 0
      %541 = vmatprep.subr.bf16.mxu0 0
      %542 = vmatpush1.bf16.msra.mxu0 0
      %543 = vmatprep.subr.bf16.mxu0 0
      %544 = vmatpush1.bf16.msra.mxu0 0
      %545 = vmatprep.subr.bf16.mxu0 0
      %546 = vmatpush1.bf16.msra.mxu0 0
      %547 = vmatprep.subr.bf16.mxu0 0
      %548 = vmatpush1.bf16.msra.mxu0 0
      %549 = vmatprep.subr.bf16.mxu0 0
      %550 = vmatpush1.bf16.msra.mxu0 0
      %551 = vmatprep.subr.bf16.mxu0 0
      %552 = vmatpush1.bf16.msra.mxu0 0
      %553 = vmatprep.subr.bf16.mxu0 0
      %554 = vmatpush1.bf16.msra.mxu0 0
      %555 = vmatprep.subr.bf16.mxu0 0
      %556 = vmatpush1.bf16.msra.mxu0 0
      %557 = vmatprep.subr.bf16.mxu0 0
      %558 = vmatpush1.bf16.msra.mxu0 0
      %559 = vmatprep.mubr.bf16.mxu0 0
      %560 = vmatmul.mubr.bf16.gmra.mrb[0].mxu0 %v516
      %v561 = vpop.f32.mrb[0].mxu0
      %v562 = vadd.f32 %v429, %v561
      %v563 = vpop.f32.mrb[0].mxu0
      %v564 = vpop.f32.mrb[0].mxu0
      %v565 = vadd.f32 %v432, %v564
      %v566 = vpop.f32.mrb[0].mxu0
      %567 = vmatprep.mubr.bf16.mxu0 0
      %568 = vmatmul.mubr.bf16.gmra.mrb[0].mxu0 %v519
      %v569 = vpop.f32.mrb[0].mxu0
      %v570 = vadd.f32 %v437, %v569
      %v571 = vpop.f32.mrb[0].mxu0
      %v572 = vpop.f32.mrb[0].mxu0
      %v573 = vadd.f32 %v440, %v572
      %v574 = vpop.f32.mrb[0].mxu0
      %575 = vmatprep.mubr.bf16.mxu0 0
      %576 = vmatmul.mubr.bf16.gmra.mrb[0].mxu0 %v522
      %v577 = vpop.f32.mrb[0].mxu0
      %v578 = vadd.f32 %v445, %v577
      %v579 = vpop.f32.mrb[0].mxu0
      %v580 = vpop.f32.mrb[0].mxu0
      %v581 = vadd.f32 %v448, %v580
      %v582 = vpop.f32.mrb[0].mxu0
      %583 = vmatprep.mubr.bf16.mxu0 0
      %584 = vmatmul.mubr.bf16.gmra.mrb[0].mxu0 %v525
      %v585 = vpop.f32.mrb[0].mxu0
      %v586 = vadd.f32 %v453, %v585
      %v587 = vpop.f32.mrb[0].mxu0
      %v588 = vpop.f32.mrb[0].mxu0
      %v589 = vadd.f32 %v456, %v588
      %v590 = vpop.f32.mrb[0].mxu0
      %591 = vdwg.mxu0
      %s592 = scalar_lea.vmem %s2, 96
      %v593 = vld [vmem:[%s592] sm:$0xf]
      %v594 = vld [vmem:[%s592 + $0x4] sm:$0xf]
      %v595 = vld [vmem:[%s592 + $0x8] sm:$0xf]
      %v596 = vld [vmem:[%s592 + $0xc] sm:$0xf]
      %v597 = vld [vmem:[%s592 + $0x10] sm:$0xf]
      %v598 = vld [vmem:[%s592 + $0x14] sm:$0xf]
      %v599 = vld [vmem:[%s592 + $0x18] sm:$0xf]
      %v600 = vld [vmem:[%s592 + $0x1c] sm:$0xf]
      %v601 = vld [vmem:[%s592 + $0x20] sm:$0xf]
      %v602 = vld [vmem:[%s592 + $0x24] sm:$0xf]
      %v603 = vld [vmem:[%s592 + $0x28] sm:$0xf]
      %v604 = vld [vmem:[%s592 + $0x2c] sm:$0xf]
      %v606 = vunpack.c.l.b16 %v299
      %v607 = vpack.c.b16 %v469, %v468
      %v608 = vpack.c.b16 %v471, %v470
      %v609 = vpack.c.b16 %v473, %v472
      %v610 = vpack.c.b16 %v606, %v474
      %v623 = vunpack.c.l.b16 %v593
      %v624 = vunpack.c.l.b16 %v594
      %v625 = vunpack.c.l.b16 %v595
      %v626 = vunpack.c.l.b16 %v596
      %v627 = vunpack.c.l.b16 %v597
      %v628 = vunpack.c.l.b16 %v598
      %v629 = vunpack.c.l.b16 %v599
      %v630 = vunpack.c.l.b16 %v600
      %v631 = vunpack.c.l.b16 %v601
      %v632 = vunpack.c.l.b16 %v602
      %v633 = vunpack.c.l.b16 %v603
      %v634 = vunpack.c.l.b16 %v604
      %v635 = vpack.c.b16 %v624, %v623
      %v636 = vpack.c.b16 %v626, %v625
      %v637 = vpack.c.b16 %v628, %v627
      %v638 = vpack.c.b16 %v630, %v629
      %v639 = vpack.c.b16 %v632, %v631
      %v640 = vpack.c.b16 %v634, %v633
      %v648 = vsel %vm381, %v607, 0
      %v651 = vsel %vm381, %v608, 0
      %v654 = vsel %vm381, %v609, 0
      %v657 = vsel %vm381, %v610, 0
      %659 = vmatprep.subr.bf16.mxu0 0
      %660 = vmatpush1.bf16.msra.mxu0 %v635
      %661 = vmatprep.subr.bf16.mxu0 0
      %662 = vmatpush1.bf16.msra.mxu0 %v636
      %663 = vmatprep.subr.bf16.mxu0 0
      %664 = vmatpush1.bf16.msra.mxu0 %v637
      %665 = vmatprep.subr.bf16.mxu0 0
      %666 = vmatpush1.bf16.msra.mxu0 %v638
      %667 = vmatprep.subr.bf16.mxu0 0
      %668 = vmatpush1.bf16.msra.mxu0 %v639
      %669 = vmatprep.subr.bf16.mxu0 0
      %670 = vmatpush1.bf16.msra.mxu0 %v640
      %671 = vmatprep.subr.bf16.mxu0 0
      %672 = vmatpush1.bf16.msra.mxu0 0
      %673 = vmatprep.subr.bf16.mxu0 0
      %674 = vmatpush1.bf16.msra.mxu0 0
      %675 = vmatprep.subr.bf16.mxu0 0
      %676 = vmatpush1.bf16.msra.mxu0 0
      %677 = vmatprep.subr.bf16.mxu0 0
      %678 = vmatpush1.bf16.msra.mxu0 0
      %679 = vmatprep.subr.bf16.mxu0 0
      %680 = vmatpush1.bf16.msra.mxu0 0
      %681 = vmatprep.subr.bf16.mxu0 0
      %682 = vmatpush1.bf16.msra.mxu0 0
      %683 = vmatprep.subr.bf16.mxu0 0
      %684 = vmatpush1.bf16.msra.mxu0 0
      %685 = vmatprep.subr.bf16.mxu0 0
      %686 = vmatpush1.bf16.msra.mxu0 0
      %687 = vmatprep.subr.bf16.mxu0 0
      %688 = vmatpush1.bf16.msra.mxu0 0
      %689 = vmatprep.subr.bf16.mxu0 0
      %690 = vmatpush1.bf16.msra.mxu0 0
      %691 = vmatprep.mubr.bf16.mxu0 0
      %692 = vmatmul.mubr.bf16.gmra.mrb[0].mxu0 %v648
      %v693 = vpop.f32.mrb[0].mxu0
      %v694 = vadd.f32 0.0, %v693
      %v695 = vpop.f32.mrb[0].mxu0
      %v696 = vpop.f32.mrb[0].mxu0
      %v697 = vadd.f32 0.0, %v696
      %v698 = vpop.f32.mrb[0].mxu0
      %699 = vmatprep.mubr.bf16.mxu0 0
      %700 = vmatmul.mubr.bf16.gmra.mrb[0].mxu0 %v651
      %v701 = vpop.f32.mrb[0].mxu0
      %v702 = vadd.f32 0.0, %v701
      %v703 = vpop.f32.mrb[0].mxu0
      %v704 = vpop.f32.mrb[0].mxu0
      %v705 = vadd.f32 0.0, %v704
      %v706 = vpop.f32.mrb[0].mxu0
      %707 = vmatprep.mubr.bf16.mxu0 0
      %708 = vmatmul.mubr.bf16.gmra.mrb[0].mxu0 %v654
      %v709 = vpop.f32.mrb[0].mxu0
      %v710 = vadd.f32 0.0, %v709
      %v711 = vpop.f32.mrb[0].mxu0
      %v712 = vpop.f32.mrb[0].mxu0
      %v713 = vadd.f32 0.0, %v712
      %v714 = vpop.f32.mrb[0].mxu0
      %715 = vmatprep.mubr.bf16.mxu0 0
      %716 = vmatmul.mubr.bf16.gmra.mrb[0].mxu0 %v657
      %v717 = vpop.f32.mrb[0].mxu0
      %v718 = vadd.f32 0.0, %v717
      %v719 = vpop.f32.mrb[0].mxu0
      %v720 = vpop.f32.mrb[0].mxu0
      %v721 = vadd.f32 0.0, %v720
      %v722 = vpop.f32.mrb[0].mxu0
      %723 = vdwg.mxu0
      %v724 = vadd.f32 %v562, %v694
      %v725 = vadd.f32 %v565, %v697
      %v726 = vadd.f32 %v570, %v702
      %v727 = vadd.f32 %v573, %v705
      %v728 = vadd.f32 %v578, %v710
      %v729 = vadd.f32 %v581, %v713
      %v730 = vadd.f32 %v586, %v718
      %v731 = vadd.f32 %v589, %v721
      %v732 = vld [vmem:[%s3] sm:$0x1]
      %v734 = vlaneseq
      %v735 = vshrl.u32 %v734, 7
      %v736 = vsub.s32 0, %v735
      %v737 = vrot.slane %v732, %v736
      %v739 = vadd.f32 %v724, %v737
      %v740 = vadd.f32 %v725, %v737
      %v741 = vadd.f32 %v726, %v737
      %v742 = vadd.f32 %v727, %v737
      %v743 = vadd.f32 %v728, %v737
      %v744 = vadd.f32 %v729, %v737
      %v745 = vadd.f32 %v730, %v737
      %v746 = vadd.f32 %v731, %v737
      %v747 = vmax.f32 %v739, 0.0
      %v748 = vmax.f32 %v740, 0.0
      %v749 = vmax.f32 %v741, 0.0
      %v750 = vmax.f32 %v742, 0.0
      %v751 = vmax.f32 %v743, 0.0
      %v752 = vmax.f32 %v744, 0.0
      %v753 = vmax.f32 %v745, 0.0
      %v754 = vmax.f32 %v746, 0.0
      %v755 = vpack.c.bf16 %v748, %v747
      %v756 = vpack.c.bf16 %v750, %v749
      %v757 = vpack.c.bf16 %v752, %v751
      %v758 = vpack.c.bf16 %v754, %v753
      %v763 = vunpack.c.l.b16 %v755
      %v764 = vunpack.c.h.b16 %v755
      %v765 = vunpack.c.l.b16 %v756
      %v766 = vunpack.c.h.b16 %v756
      %v767 = vunpack.c.l.b16 %v757
      %v768 = vunpack.c.h.b16 %v757
      %v769 = vunpack.c.l.b16 %v758
      %v770 = vunpack.c.h.b16 %v758
      %v771 = vpack.c.b16 %v763, %v763
      %v772 = vpack.c.b16 %v764, %v764
      %v773 = vpack.c.b16 %v765, %v765
      %v774 = vpack.c.b16 %v766, %v766
      %v775 = vpack.c.b16 %v767, %v767
      %v776 = vpack.c.b16 %v768, %v768
      %v777 = vpack.c.b16 %v769, %v769
      %v778 = vpack.c.b16 %v770, %v770
      %vm787 = vcmask 257024
      %788 = vst.msk [vmem:[%s280] sm:$0xf] %vm787, %v771
      %789 = vst.msk [vmem:[%s280 + $0x4] sm:$0xf] %vm787, %v772
      %790 = vst.msk [vmem:[%s280 + $0x8] sm:$0xf] %vm787, %v773
      %791 = vst.msk [vmem:[%s280 + $0xc] sm:$0xf] %vm787, %v774
      %792 = vst.msk [vmem:[%s280 + $0x10] sm:$0xf] %vm787, %v775
      %793 = vst.msk [vmem:[%s280 + $0x14] sm:$0xf] %vm787, %v776
      %794 = vst.msk [vmem:[%s280 + $0x18] sm:$0xf] %vm787, %v777
      %795 = vst.msk [vmem:[%s280 + $0x1c] sm:$0xf] %vm787, %v778
      %s796 = smul.u32 8, %s20
      %p797 = scmp.lt.s32.totalorder %s19, 1
      %s798 = scalar_select %p797, %s19, 1
      %p799 = scmp.lt.s32.totalorder %s796, 7
      %s800 = scalar_select %p799, %s796, 7
      %s801 = smul.addr %s798, 8
      %s802 = sadd.s32 %s800, %s801
      %s803 = smul.addr %s802, 4
      %s804 = scalar_lea.vmem %s4, %s803
      // Predicated region
      $region37: #{subsample_forward.4} parent=35 // pred_check
        %p805 = pneg %p149
      $region38: #{subsample_forward.4} parent=35 // pred_check_branch
        %807 = sbr.rel (%p805) target = $region40
      $region39: #{subsample_forward.4} parent=35 // pred_region
        %s808 = smul.u32 8, %s20
      $region40: #{subsample_forward.4} parent=35 // pred_fallthru
        _
    $region36: #{subsample_forward.4} parent=5 // pred_fallthru
      _
    %p809 = scmp.le.s32.totalorder 2, %s10
    // Predicated region
    $region41: #{subsample_forward.4} parent=5 // pred_check
      %p810 = pneg %p809
    $region42: #{subsample_forward.4} parent=5 // pred_check_branch
      %812 = sbr.rel (%p810) target = $region44
    $region43: #{subsample_forward.4} parent=5 // pred_region
      %s813 = ssub.s32 %s10, 2
      // Predicated region
      $region45: #{subsample_forward.4} parent=43 // pred_check
        %p814 = pneg %p155
      $region46: #{subsample_forward.4} parent=43 // pred_check_branch
        %816 = sbr.rel (%p814) target = $region48
      $region47: #{subsample_forward.4} parent=43 // pred_region
        %s817 = smul.u32 8, %s22
        %p818 = scmp.lt.s32.totalorder %s21, 1
        %s819 = scalar_select %p818, %s21, 1
        %p820 = scmp.lt.s32.totalorder %s817, 7
        %s821 = scalar_select %p820, %s817, 7
        %s822 = smul.addr %s819, 8
        %s823 = sadd.s32 %s821, %s822
        %s824 = smul.addr %s823, 4
        %s825 = scalar_lea.vmem %s4, %s824
      $region48: #{subsample_forward.4} parent=43 // pred_fallthru
        _
    $region44: #{subsample_forward.4} parent=5 // pred_fallthru
      _
  $region6: #{subsample_forward.4} parent=0 // loop_footer
    %s14 = sadd.s32 1, %s10
  $region7: #{subsample_forward.4} parent=0 // loop_footer_branch
    %9 = sbr.rel target = $region3
  $region8: #{subsample_forward.4} parent=0 // loop_exit
    _

// kernel: subsample_forward.5
$region0: #{subsample_forward.5}
  #allocation0 [shape = 'u32[]', space=smem, size = 0x4, offset = 0x4, fixed_abs, tag = 'smem constant byte address 0x4 - core index']
  #allocation1 [shape = 'u32[144,128]{1,0:T(1,128)}', space=vmem, size = 0x12000, scoped, tag = 'internal scratch']
  %s0 = inlined_call_operand.vmem [shape: bf16[2,8,256], index: 0, kind: input, shape index: {}]
  %s1 = inlined_call_operand.vmem [shape: bf16[256,32], index: 1, kind: input, shape index: {}]
  %s2 = inlined_call_operand.vmem [shape: f32[1,32], index: 2, kind: input, shape index: {}]
  %s3 = inlined_call_operand.vmem [shape: f32[2,8,1], index: 3, kind: input, shape index: {}]
  %s4 = inlined_call_operand.vmem [shape: f32[2,8,32], index: 4, kind: output, shape index: {}]
  %s5 = sld [smem:[#allocation0]]
  $region49: #{subsample_forward.5} parent=0
    _
  %s7 = ssub.s32 1, %s5
  %s8 = scalar_select 0, %s7, %s5
  loop: start=0, step=1, limit=4
  $region2: #{subsample_forward.5} parent=0 // loop_pre_header
    _
  $region3: #{subsample_forward.5} parent=0 // loop_header
    %s10 = sphi 0, %s14
    %p11 = scmp.ge.s32.totalorder %s10, 4
    %s17 = sphi 0, %s29
    %s18 = sphi 0, %s25
    %s19 = sphi 0, %s17
    %s20 = sphi 0, %s18
    %s21 = sphi 0, %s19
    %s22 = sphi 0, %s20
    %s34 = sphi 0, %s36
    %s37 = sphi 0, %s34
    %s38 = sphi 0, %s37
    %s54 = sphi 0, %s38
    %s58 = sphi 0, %s58
    %s60 = sphi 0, %s58
    %s61 = sphi 0, %s60
    %s75 = sphi 0, %s61
    %s79 = sphi 0, %s79
    %s81 = sphi 0, %s79
    %s82 = sphi 0, %s81
    %s96 = sphi 0, %s82
    %s104 = sphi 0, %s106
    %s107 = sphi 0, %s104
    %s108 = sphi 0, %s107
    %s124 = sphi 0, %s108
    %s132 = sphi 0, %s134
    %s135 = sphi 0, %s132
    %s136 = sphi 0, %s135
    %s152 = sphi 0, %s136
  $region4: #{subsample_forward.5} parent=0 // loop_header_branch
    %13 = sbr.rel (%p11) target = $region8
  $region5: #{subsample_forward.5} parent=0 // loop_body
    %s15 = ssub.s32 %s10, 1
    %s16 = ssub.s32 %s10, 2
    %s23 = sadd.s32 1, %s18
    %p24 = scmp.ge.s32.totalorder %s23, 1
    %s25 = scalar_select %p24, 0, %s23
    %s26 = sadd.s32 1, %s17
    %s27 = scalar_select %p24, %s26, %s17
    %p28 = scmp.ge.s32.totalorder %s27, 2
    %s29 = scalar_select %p28, 0, %s27
    %s30 = ssub.s32 %s17, %s29
    %s31 = ssub.s32 %s18, %s25
    %s32 = sor.u32 %s30, %s31
    %p33 = scmp.eq.s32.totalorder %s32, 0
    %s35 = sadd.s32 %s34, 1
    %s36 = scalar_select %p33, %s34, %s35
    %p39 = pneg %p33
    %p40 = scmp.eq.s32.totalorder %s10, 1
    %p41 = por %p39, %p40
    %p42 = scmp.ne.s32.totalorder %s34, %s37
    %p43 = scmp.eq.s32.totalorder %s10, 0
    %p44 = por %p42, %p43
    %p45 = scmp.ne.s32.totalorder %s34, %s37
    %p46 = scmp.eq.s32.totalorder %s15, 1
    %p47 = por %p45, %p46
    %p48 = scmp.ne.s32.totalorder %s37, %s38
    %p49 = scmp.eq.s32.totalorder %s15, 0
    %p50 = por %p48, %p49
    %p51 = scmp.ne.s32.totalorder %s37, %s38
    %p52 = scmp.eq.s32.totalorder %s16, 1
    %p53 = por %p51, %p52
    %p55 = scmp.ne.s32.totalorder %s38, %s54
    %p56 = scmp.eq.s32.totalorder %s16, 0
    %p57 = por %p55, %p56
    %s59 = sadd.s32 %s58, 1
    %p62 = scmp.eq.s32.totalorder %s10, 1
    %p63 = scmp.ne.s32.totalorder %s58, %s60
    %p64 = scmp.eq.s32.totalorder %s10, 0
    %p65 = por %p63, %p64
    %p66 = scmp.ne.s32.totalorder %s58, %s60
    %p67 = scmp.eq.s32.totalorder %s15, 1
    %p68 = por %p66, %p67
    %p69 = scmp.ne.s32.totalorder %s60, %s61
    %p70 = scmp.eq.s32.totalorder %s15, 0
    %p71 = por %p69, %p70
    %p72 = scmp.ne.s32.totalorder %s60, %s61
    %p73 = scmp.eq.s32.totalorder %s16, 1
    %p74 = por %p72, %p73
    %p76 = scmp.ne.s32.totalorder %s61, %s75
    %p77 = scmp.eq.s32.totalorder %s16, 0
    %p78 = por %p76, %p77
    %s80 = sadd.s32 %s79, 1
    %p83 = scmp.eq.s32.totalorder %s10, 1
    %p84 = scmp.ne.s32.totalorder %s79, %s81
    %p85 = scmp.eq.s32.totalorder %s10, 0
    %p86 = por %p84, %p85
    %p87 = scmp.ne.s32.totalorder %s79, %s81
    %p88 = scmp.eq.s32.totalorder %s15, 1
    %p89 = por %p87, %p88
    %p90 = scmp.ne.s32.totalorder %s81, %s82
    %p91 = scmp.eq.s32.totalorder %s15, 0
    %p92 = por %p90, %p91
    %p93 = scmp.ne.s32.totalorder %s81, %s82
    %p94 = scmp.eq.s32.totalorder %s16, 1
    %p95 = por %p93, %p94
    %p97 = scmp.ne.s32.totalorder %s82, %s96
    %p98 = scmp.eq.s32.totalorder %s16, 0
    %p99 = por %p97, %p98
    %s100 = ssub.s32 %s17, %s29
    %s101 = ssub.s32 %s18, %s25
    %s102 = sor.u32 %s100, %s101
    %p103 = scmp.eq.s32.totalorder %s102, 0
    %s105 = sadd.s32 %s104, 1
    %s106 = scalar_select %p103, %s104, %s105
    %p109 = pneg %p103
    %p110 = scmp.eq.s32.totalorder %s10, 1
    %p111 = por %p109, %p110
    %p112 = scmp.ne.s32.totalorder %s104, %s107
    %p113 = scmp.eq.s32.totalorder %s10, 0
    %p114 = por %p112, %p113
    %p115 = scmp.ne.s32.totalorder %s104, %s107
    %p116 = scmp.eq.s32.totalorder %s15, 1
    %p117 = por %p115, %p116
    %p118 = scmp.ne.s32.totalorder %s107, %s108
    %p119 = scmp.eq.s32.totalorder %s15, 0
    %p120 = por %p118, %p119
    %p121 = scmp.ne.s32.totalorder %s107, %s108
    %p122 = scmp.eq.s32.totalorder %s16, 1
    %p123 = por %p121, %p122
    %p125 = scmp.ne.s32.totalorder %s108, %s124
    %p126 = scmp.eq.s32.totalorder %s16, 0
    %p127 = por %p125, %p126
    %s128 = ssub.s32 %s17, %s29
    %s129 = ssub.s32 %s18, %s25
    %s130 = sor.u32 %s128, %s129
    %p131 = scmp.eq.s32.totalorder %s130, 0
    %s133 = sadd.s32 %s132, 1
    %s134 = scalar_select %p131, %s132, %s133
    %p137 = pneg %p131
    %p138 = scmp.eq.s32.totalorder %s10, 1
    %p139 = por %p137, %p138
    %p140 = scmp.ne.s32.totalorder %s132, %s135
    %p141 = scmp.eq.s32.totalorder %s10, 0
    %p142 = por %p140, %p141
    %p143 = scmp.ne.s32.totalorder %s132, %s135
    %p144 = scmp.eq.s32.totalorder %s15, 1
    %p145 = por %p143, %p144
    %p146 = scmp.ne.s32.totalorder %s135, %s136
    %p147 = scmp.eq.s32.totalorder %s15, 0
    %p148 = por %p146, %p147
    %p149 = scmp.ne.s32.totalorder %s135, %s136
    %p150 = scmp.eq.s32.totalorder %s16, 1
    %p151 = por %p149, %p150
    %p153 = scmp.ne.s32.totalorder %s136, %s152
    %p154 = scmp.eq.s32.totalorder %s16, 0
    %p155 = por %p153, %p154
    %p156 = scmp.le.s32.totalorder 1, %s10
    %p157 = scmp.lt.s32.totalorder %s10, 3
    %p158 = pnand %p156, %p157
    %p159 = pneg %p158
    // Predicated region
    $region9: #{subsample_forward.5} parent=5 // pred_check
      _
    $region10: #{subsample_forward.5} parent=5 // pred_check_branch
      %161 = sbr.rel (%p158) target = $region12
    $region11: #{subsample_forward.5} parent=5 // pred_region
      %s162 = ssub.s32 %s10, 1
      // Predicated region
      $region13: #{subsample_forward.5} parent=11 // pred_check
        %p163 = pneg %p71
      $region14: #{subsample_forward.5} parent=11 // pred_check_branch
        %165 = sbr.rel (%p163) target = $region16
      $region15: #{subsample_forward.5} parent=11 // pred_region
        _
      $region16: #{subsample_forward.5} parent=11 // pred_fallthru
        _
      // Predicated region
      $region17: #{subsample_forward.5} parent=11 // pred_check
        %p166 = pneg %p92
      $region18: #{subsample_forward.5} parent=11 // pred_check_branch
        %168 = sbr.rel (%p166) target = $region20
      $region19: #{subsample_forward.5} parent=11 // pred_region
        _
      $region20: #{subsample_forward.5} parent=11 // pred_fallthru
        _
    $region12: #{subsample_forward.5} parent=5 // pred_fallthru
      _
    %p169 = scmp.lt.s32.totalorder %s10, 2
    // Predicated region
    $region21: #{subsample_forward.5} parent=5 // pred_check
      %p170 = pneg %p169
    $region22: #{subsample_forward.5} parent=5 // pred_check_branch
      %172 = sbr.rel (%p170) target = $region24
    $region23: #{subsample_forward.5} parent=5 // pred_region
      // Predicated region
      $region25: #{subsample_forward.5} parent=23 // pred_check
        %p173 = pneg %p44
      $region26: #{subsample_forward.5} parent=23 // pred_check_branch
        %175 = sbr.rel (%p173) target = $region28
      $region27: #{subsample_forward.5} parent=23 // pred_region
        %p176 = scmp.lt.s32.totalorder %s17, 1
        %s177 = scalar_select %p176, %s17, 1
        %p178 = scmp.lt.s32.totalorder %s18, 0
        %s179 = scalar_select %p178, %s18, 0
        %s180 = smul.addr %s179, 2
        %s181 = smul.addr %s177, 2
        %s182 = sadd.s32 %s180, %s181
        %s183 = smul.addr %s182, 4
        %s184 = scalar_lea.vmem %s0, %s183
      $region28: #{subsample_forward.5} parent=23 // pred_fallthru
        _
      // Predicated region
      $region29: #{subsample_forward.5} parent=23 // pred_check
        %p185 = pneg %p114
      $region30: #{subsample_forward.5} parent=23 // pred_check_branch
        %187 = sbr.rel (%p185) target = $region32
      $region31: #{subsample_forward.5} parent=23 // pred_region
        %p188 = scmp.lt.s32.totalorder %s17, 1
        %s189 = scalar_select %p188, %s17, 1
        %p190 = scmp.lt.s32.totalorder %s18, 0
        %s191 = scalar_select %p190, %s18, 0
        %s192 = sadd.s32 %s191, %s189
        %s193 = smul.addr %s192, 8
        %s194 = scalar_lea.vmem %s3, %s193
      $region32: #{subsample_forward.5} parent=23 // pred_fallthru
        _
    $region24: #{subsample_forward.5} parent=5 // pred_fallthru
      _
    %p195 = scmp.le.s32.totalorder 1, %s10
    %p196 = scmp.lt.s32.totalorder %s10, 3
    %p197 = pnand %p195, %p196
    %p198 = pneg %p197
    // Predicated region
    $region33: #{subsample_forward.5} parent=5 // pred_check
      _
    $region34: #{subsample_forward.5} parent=5 // pred_check_branch
      %200 = sbr.rel (%p197) target = $region36
    $region35: #{subsample_forward.5} parent=5 // pred_region
      %s201 = ssub.s32 %s10, 1
      %p202 = scmp.lt.s32.totalorder %s19, 1
      %s203 = scalar_select %p202, %s19, 1
      %p204 = scmp.lt.s32.totalorder %s20, 0
      %s205 = scalar_select %p204, %s20, 0
      %s206 = smul.addr %s205, 2
      %s207 = smul.addr %s203, 2
      %s208 = sadd.s32 %s206, %s207
      %s209 = smul.addr %s208, 4
      %s210 = scalar_lea.vmem %s0, %s209
      %p211 = pneg %p50
      %p212 = pneg %p47
      %p213 = pneg %p71
      %p214 = pneg %p68
      %p215 = pneg %p92
      %p216 = pneg %p89
      %p217 = scmp.lt.s32.totalorder %s19, 1
      %s218 = scalar_select %p217, %s19, 1
      %p219 = scmp.lt.s32.totalorder %s20, 0
      %s220 = scalar_select %p219, %s20, 0
      %s221 = sadd.s32 %s220, %s218
      %s222 = smul.addr %s221, 8
      %s223 = scalar_lea.vmem %s3, %s222
      %p224 = pneg %p120
      %p225 = pneg %p117
      %p226 = pneg %p148
      %p227 = pneg %p145
      %p228 = scmp.lt.s32.totalorder %s19, 1
      %s229 = scalar_select %p228, %s19, 1
      %p230 = scmp.lt.s32.totalorder %s20, 0
      %s231 = scalar_select %p230, %s20, 0
      %s232 = sadd.s32 %s231, %s229
      %s233 = smul.addr %s232, 8
      %s234 = scalar_lea.vmem %s4, %s233
      %p235 = scmp.lt.s32.totalorder %s19, 1
      %s236 = scalar_select %p235, %s19, 1
      %p237 = scmp.lt.s32.totalorder %s20, 0
      %s238 = scalar_select %p237, %s20, 0
      %s239 = smul.addr %s238, 2
      %s240 = smul.addr %s236, 2
      %s241 = sadd.s32 %s239, %s240
      %s242 = smul.addr %s241, 4
      %s243 = scalar_lea.vmem %s0, %s242
      %p244 = scmp.lt.s32.totalorder %s19, 1
      %s245 = scalar_select %p244, %s19, 1
      %p246 = scmp.lt.s32.totalorder %s20, 0
      %s247 = scalar_select %p246, %s20, 0
      %s248 = sadd.s32 %s247, %s245
      %s249 = smul.addr %s248, 8
      %s250 = scalar_lea.vmem %s3, %s249
      %p251 = scmp.lt.s32.totalorder %s19, 1
      %s252 = scalar_select %p251, %s19, 1
      %p253 = scmp.lt.s32.totalorder %s20, 0
      %s254 = scalar_select %p253, %s20, 0
      %s255 = sadd.s32 %s254, %s252
      %s256 = smul.addr %s255, 8
      %s257 = scalar_lea.vmem %s4, %s256
      %v259 = vld [vmem:[%s243] sm:$0xff]
      %v260 = vld [vmem:[%s1] sm:$0xf]
      %v261 = vld [vmem:[%s1 + $0x4] sm:$0xf]
      %v262 = vld [vmem:[%s1 + $0x8] sm:$0xf]
      %v263 = vld [vmem:[%s1 + $0xc] sm:$0xf]
      %v264 = vld [vmem:[%s1 + $0x10] sm:$0xf]
      %v265 = vld [vmem:[%s1 + $0x14] sm:$0xf]
      %v266 = vld [vmem:[%s1 + $0x18] sm:$0xf]
      %v267 = vld [vmem:[%s1 + $0x1c] sm:$0xf]
      %v268 = vld [vmem:[%s1 + $0x20] sm:$0xf]
      %v269 = vld [vmem:[%s1 + $0x24] sm:$0xf]
      %v270 = vld [vmem:[%s1 + $0x28] sm:$0xf]
      %v271 = vld [vmem:[%s1 + $0x2c] sm:$0xf]
      %v272 = vld [vmem:[%s1 + $0x30] sm:$0xf]
      %v273 = vld [vmem:[%s1 + $0x34] sm:$0xf]
      %v274 = vld [vmem:[%s1 + $0x38] sm:$0xf]
      %v275 = vld [vmem:[%s1 + $0x3c] sm:$0xf]
      %v276 = vld [vmem:[%s1 + $0x40] sm:$0xf]
      %v277 = vld [vmem:[%s1 + $0x44] sm:$0xf]
      %v278 = vld [vmem:[%s1 + $0x48] sm:$0xf]
      %v279 = vld [vmem:[%s1 + $0x4c] sm:$0xf]
      %v280 = vld [vmem:[%s1 + $0x50] sm:$0xf]
      %v281 = vld [vmem:[%s1 + $0x54] sm:$0xf]
      %v282 = vld [vmem:[%s1 + $0x58] sm:$0xf]
      %v283 = vld [vmem:[%s1 + $0x5c] sm:$0xf]
      %v284 = vld [vmem:[%s1 + $0x60] sm:$0xf]
      %v285 = vld [vmem:[%s1 + $0x64] sm:$0xf]
      %v286 = vld [vmem:[%s1 + $0x68] sm:$0xf]
      %v287 = vld [vmem:[%s1 + $0x6c] sm:$0xf]
      %v288 = vld [vmem:[%s1 + $0x70] sm:$0xf]
      %v289 = vld [vmem:[%s1 + $0x74] sm:$0xf]
      %v290 = vld [vmem:[%s1 + $0x78] sm:$0xf]
      %v291 = vld [vmem:[%s1 + $0x7c] sm:$0xf]
      %v293 = vunpack.c.l.b16 %v259
      %v294 = vunpack.c.h.b16 %v259
      %v295 = vpack.c.b16 %v293, %v293
      %v296 = vpack.c.b16 %v294, %v294
      %v331 = vunpack.c.l.b16 %v260
      %v332 = vunpack.c.l.b16 %v261
      %v333 = vunpack.c.l.b16 %v262
      %v334 = vunpack.c.l.b16 %v263
      %v335 = vunpack.c.l.b16 %v264
      %v336 = vunpack.c.l.b16 %v265
      %v337 = vunpack.c.l.b16 %v266
      %v338 = vunpack.c.l.b16 %v267
      %v339 = vunpack.c.l.b16 %v268
      %v340 = vunpack.c.l.b16 %v269
      %v341 = vunpack.c.l.b16 %v270
      %v342 = vunpack.c.l.b16 %v271
      %v343 = vunpack.c.l.b16 %v272
      %v344 = vunpack.c.l.b16 %v273
      %v345 = vunpack.c.l.b16 %v274
      %v346 = vunpack.c.l.b16 %v275
      %v347 = vunpack.c.l.b16 %v276
      %v348 = vunpack.c.l.b16 %v277
      %v349 = vunpack.c.l.b16 %v278
      %v350 = vunpack.c.l.b16 %v279
      %v351 = vunpack.c.l.b16 %v280
      %v352 = vunpack.c.l.b16 %v281
      %v353 = vunpack.c.l.b16 %v282
      %v354 = vunpack.c.l.b16 %v283
      %v355 = vunpack.c.l.b16 %v284
      %v356 = vunpack.c.l.b16 %v285
      %v357 = vunpack.c.l.b16 %v286
      %v358 = vunpack.c.l.b16 %v287
      %v359 = vunpack.c.l.b16 %v288
      %v360 = vunpack.c.l.b16 %v289
      %v361 = vunpack.c.l.b16 %v290
      %v362 = vunpack.c.l.b16 %v291
      %v363 = vpack.c.b16 %v332, %v331
      %v364 = vpack.c.b16 %v334, %v333
      %v365 = vpack.c.b16 %v336, %v335
      %v366 = vpack.c.b16 %v338, %v337
      %v367 = vpack.c.b16 %v340, %v339
      %v368 = vpack.c.b16 %v342, %v341
      %v369 = vpack.c.b16 %v344, %v343
      %v370 = vpack.c.b16 %v346, %v345
      %v371 = vpack.c.b16 %v348, %v347
      %v372 = vpack.c.b16 %v350, %v349
      %v373 = vpack.c.b16 %v352, %v351
      %v374 = vpack.c.b16 %v354, %v353
      %v375 = vpack.c.b16 %v356, %v355
      %v376 = vpack.c.b16 %v358, %v357
      %v377 = vpack.c.b16 %v360, %v359
      %v378 = vpack.c.b16 %v362, %v361
      %395 = vmatprep.subr.bf16.mxu0 0
      %396 = vmatpush1.bf16.msra.mxu0 %v363
      %397 = vmatprep.subr.bf16.mxu0 0
      %398 = vmatpush1.bf16.msra.mxu0 %v364
      %399 = vmatprep.subr.bf16.mxu0 0
      %400 = vmatpush1.bf16.msra.mxu0 %v365
      %401 = vmatprep.subr.bf16.mxu0 0
      %402 = vmatpush1.bf16.msra.mxu0 %v366
      %403 = vmatprep.subr.bf16.mxu0 0
      %404 = vmatpush1.bf16.msra.mxu0 %v367
      %405 = vmatprep.subr.bf16.mxu0 0
      %406 = vmatpush1.bf16.msra.mxu0 %v368
      %407 = vmatprep.subr.bf16.mxu0 0
      %408 = vmatpush1.bf16.msra.mxu0 %v369
      %409 = vmatprep.subr.bf16.mxu0 0
      %410 = vmatpush1.bf16.msra.mxu0 %v370
      %411 = vmatprep.subr.bf16.mxu0 0
      %412 = vmatpush1.bf16.msra.mxu0 %v371
      %413 = vmatprep.subr.bf16.mxu0 0
      %414 = vmatpush1.bf16.msra.mxu0 %v372
      %415 = vmatprep.subr.bf16.mxu0 0
      %416 = vmatpush1.bf16.msra.mxu0 %v373
      %417 = vmatprep.subr.bf16.mxu0 0
      %418 = vmatpush1.bf16.msra.mxu0 %v374
      %419 = vmatprep.subr.bf16.mxu0 0
      %420 = vmatpush1.bf16.msra.mxu0 %v375
      %421 = vmatprep.subr.bf16.mxu0 0
      %422 = vmatpush1.bf16.msra.mxu0 %v376
      %423 = vmatprep.subr.bf16.mxu0 0
      %424 = vmatpush1.bf16.msra.mxu0 %v377
      %425 = vmatprep.subr.bf16.mxu0 0
      %426 = vmatpush1.bf16.msra.mxu0 %v378
      %427 = vmatprep.mubr.bf16.mxu0 %v296
      %428 = vmatmul.mubr.bf16.gmra.mrb[0].mxu0 %v295
      %v429 = vpop.f32.mrb[0].mxu0
      %v430 = vadd.f32 0.0, %v429
      %v431 = vpop.f32.mrb[0].mxu0
      %v432 = vpop.f32.mrb[0].mxu0
      %v433 = vpop.f32.mrb[0].mxu0
      %434 = vdwg.mxu0
      %v435 = vld [vmem:[%s250] sm:$0xff]
      %v436 = vsub.f32 1.0, %v435
      %438 = vset.pattern.permute.xlu0 0
      %439 = vperm.xlu0 %438, %v436
      %v440 = vpop.permute.xlu0 %439
      %v442 = vmul.f32 %v430, %v440
      %v443 = vld [vmem:[%s2] sm:$0x1]
      %v445 = vlaneseq
      %v446 = vshrl.u32 %v445, 7
      %v447 = vsub.s32 0, %v446
      %v448 = vrot.slane %v443, %v447
      %v450 = vadd.f32 %v442, %v448
      %vm451 = vcmask 261120
      %452 = vst.msk [vmem:[%s257] sm:$0xff] %vm451, %v450
      %p453 = scmp.lt.s32.totalorder %s19, 1
      %s454 = scalar_select %p453, %s19, 1
      %p455 = scmp.lt.s32.totalorder %s20, 0
      %s456 = scalar_select %p455, %s20, 0
      %s457 = sadd.s32 %s456, %s454
      %s458 = smul.addr %s457, 8
      %s459 = scalar_lea.vmem %s4, %s458
      // Predicated region
      $region37: #{subsample_forward.5} parent=35 // pred_check
        %p460 = pneg %p145
      $region38: #{subsample_forward.5} parent=35 // pred_check_branch
        %462 = sbr.rel (%p460) target = $region40
      $region39: #{subsample_forward.5} parent=35 // pred_region
        _
      $region40: #{subsample_forward.5} parent=35 // pred_fallthru
        _
    $region36: #{subsample_forward.5} parent=5 // pred_fallthru
      _
    %p463 = scmp.le.s32.totalorder 2, %s10
    // Predicated region
    $region41: #{subsample_forward.5} parent=5 // pred_check
      %p464 = pneg %p463
    $region42: #{subsample_forward.5} parent=5 // pred_check_branch
      %466 = sbr.rel (%p464) target = $region44
    $region43: #{subsample_forward.5} parent=5 // pred_region
      %s467 = ssub.s32 %s10, 2
      // Predicated region
      $region45: #{subsample_forward.5} parent=43 // pred_check
        %p468 = pneg %p151
      $region46: #{subsample_forward.5} parent=43 // pred_check_branch
        %470 = sbr.rel (%p468) target = $region48
      $region47: #{subsample_forward.5} parent=43 // pred_region
        %p471 = scmp.lt.s32.totalorder %s21, 1
        %s472 = scalar_select %p471, %s21, 1
        %p473 = scmp.lt.s32.totalorder %s22, 0
        %s474 = scalar_select %p473, %s22, 0
        %s475 = sadd.s32 %s474, %s472
        %s476 = smul.addr %s475, 8
        %s477 = scalar_lea.vmem %s4, %s476
      $region48: #{subsample_forward.5} parent=43 // pred_fallthru
        _
    $region44: #{subsample_forward.5} parent=5 // pred_fallthru
      _
  $region6: #{subsample_forward.5} parent=0 // loop_footer
    %s14 = sadd.s32 1, %s10
  $region7: #{subsample_forward.5} parent=0 // loop_footer_branch
    %9 = sbr.rel target = $region3
  $region8: #{subsample_forward.5} parent=0 // loop_exit
    _

</llo_original>
